<compile_context>
chip_gen: v7x
topology: tpu7x:2x2x1
jax: 0.10.0
libtpu: 0.0.40
codegen_flags: <defaults>
</compile_context>

<pallas_src>
import numpy as np
import jax
import jax.numpy as jnp
from jax import lax
from jax.experimental import pallas as pl
from jax.experimental.pallas import tpu as pltpu

# Concrete sizes implied by flat_input_size = 32*2*2 = 128.
IN_C, IN_H, IN_W = 4, 16, 16
CH = (8, 16, 32)
HID, OUT = 32, 10
LANE = 128                                  # W_s * C_s == 128 at every conv stage
A0_WIDTH = (IN_H + 2) * IN_W * IN_C         # 1152: y-padded input, 64 lanes / image row


# ---------------------------------------------------------------------------
# Fused Pallas kernel
# ---------------------------------------------------------------------------
def fused_forward_kernel(x_ref, wb1_ref, s1_ref, wb2_ref, s2_ref, wb3_ref, s3_ref,
                         w1_ref, fb1_ref, w2_ref, fb2_ref, o_ref):
    tn = x_ref.shape[0]
    f32, bf16 = jnp.float32, jnp.bfloat16

    def conv_pool_stage(ap, wb, shift, n_rows_out, bw, cout):
        """3x3 SAME conv + BN(eval) + ReLU + 2x2 maxpool; one MXU dot / pooled row.

        ap    : (tn, (2*n_rows_out + 2) * bw) bf16, y-zero-padded input; one
                bw-lane block per image row (block-lane = xstride * x + ci).
        wb    : (4*bw, 256) bf16 banded conv weight (BN scale folded in); the
                256 output lanes hold the two conv rows (q = 0, 1) of the pair.
        shift : (1, 128) f32 BN shift tiled per output x.
        Returns n_rows_out blocks (tn, 128) bf16; valid lanes 2*cout*xp + co.
        """
        blocks = []
        for yo in range(n_rows_out):
            lhs = ap[:, 2 * yo * bw:(2 * yo + 4) * bw]          # 4 image rows
            y = jnp.dot(lhs, wb, preferred_element_type=f32)    # (tn, 256)
            r = jnp.maximum(y[:, :LANE], y[:, LANE:])           # maxpool over y
            r = jnp.maximum(r + shift, 0.0)                     # BN shift + ReLU (f32)
            rot = jnp.concatenate([r[:, cout:], r[:, :cout]], axis=-1)
            r = jnp.maximum(r, rot)                             # maxpool over x
            blocks.append(r.astype(bf16))
        return blocks

    zpad = jnp.zeros((tn, LANE), bf16)

    # stage 1: 16x16x4 -> 8x8x8   (input already y-padded by the wrapper)
    p1 = conv_pool_stage(x_ref[...], wb1_ref[...], s1_ref[...], 8, 64, CH[0])
    # stage 2: 8x8x8 -> 4x4x16
    a1 = jnp.concatenate([zpad] + p1 + [zpad], axis=-1)         # (tn, 1280)
    p2 = conv_pool_stage(a1, wb2_ref[...], s2_ref[...], 4, LANE, CH[1])
    # stage 3: 4x4x16 -> 2x2x32
    a2 = jnp.concatenate([zpad] + p2 + [zpad], axis=-1)         # (tn, 768)
    p3 = conv_pool_stage(a2, wb3_ref[...], s3_ref[...], 2, LANE, CH[2])

    # flatten (NCHW order folded into fc1 weight) + fc1 + ReLU + fc2
    # TODO(synk): dropout is the identity here (eval-mode semantics only).
    a3 = jnp.concatenate(p3, axis=-1)                           # (tn, 256)
    hid = jnp.dot(a3, w1_ref[...], preferred_element_type=f32) + fb1_ref[...]
    hid = jnp.maximum(hid, 0.0)
    out = jnp.dot(hid.astype(bf16), w2_ref[...], preferred_element_type=f32)
    o_ref[...] = (out + fb2_ref[...]).astype(o_ref.dtype)


# ---------------------------------------------------------------------------
# Host-side weight construction (done once, outside jit)
# ---------------------------------------------------------------------------
def _build_conv_band(w_hwio, scale, w_in, bw_in, xstride_in):
    """Banded conv weight for one stage as a single (4*bw_in, 256) matmul RHS.

    Input window = 4 consecutive row blocks (padded rows 2yo .. 2yo+3, i.e.
    original rows 2yo-1 .. 2yo+2); block-lane of V[yin, xi, ci] = xstride*xi+ci.
    Output lane = q*128 + Co*xo + co for the two conv rows q of the pool pair.
    SAME x-padding is realized by simply omitting out-of-range taps.
    """
    kh, kw, ci_n, co_n = w_hwio.shape
    assert (kh, kw) == (3, 3) and w_in * co_n == LANE
    ws = np.asarray(w_hwio, np.float32) * np.asarray(scale, np.float32)[None, None, None, :]
    out = np.zeros((4 * bw_in, 2 * LANE), np.float32)
    ci = np.arange(ci_n)
    co = np.arange(co_n)
    for q in range(2):                  # conv row within the 2x2 pool window
        for dy in range(3):
            r = q + dy                  # input row within the 4-row window
            for dx in range(3):
                xo = np.arange(w_in)
                xi = xo + dx - 1
                ok = (xi >= 0) & (xi < w_in)
                xo_v, xi_v = xo[ok], xi[ok]
                rows = r * bw_in + xstride_in * xi_v[:, None] + ci[None, :]   # (X, Ci)
                cols = q * LANE + co_n * xo_v[:, None] + co[None, :]          # (X, Co)
                out[rows[:, :, None], cols[:, None, :]] = ws[dy, dx][None, :, :]
    return out


def _build_fc1(fc1_w):
    """Regroup fc1 (NCHW-flat 128 -> 32) to read the kernel's stage-3 lane layout."""
    w = np.asarray(fc1_w, np.float32)
    out = np.zeros((2 * LANE, HID), np.float32)
    for yo in range(2):
        for xp in range(2):
            for c in range(CH[2]):
                out[yo * LANE + 64 * xp + c, :] = w[c * 4 + yo * 2 + xp, :]
    return out


def prepare_kernel_params(params, compute_dtype=jnp.bfloat16):
    """Fold BN (eval) into conv weights and build the kernel-format arrays."""
    w2p = np.zeros((HID, LANE), np.float32)
    w2p[:, :OUT] = np.asarray(params["fc2_w"], np.float32)
    fb2 = np.zeros((1, LANE), np.float32)
    fb2[0, :OUT] = np.asarray(params["fc2_b"], np.float32)
    return {
        "wb1": jnp.asarray(_build_conv_band(params["conv1_w"], params["bn1_scale"],
                                            16, 64, 4), compute_dtype),
        "s1": jnp.asarray(np.tile(np.asarray(params["bn1_shift"], np.float32), 16)[None, :]),
        "wb2": jnp.asarray(_build_conv_band(params["conv2_w"], params["bn2_scale"],
                                            8, 128, 16), compute_dtype),
        "s2": jnp.asarray(np.tile(np.asarray(params["bn2_shift"], np.float32), 8)[None, :]),
        "wb3": jnp.asarray(_build_conv_band(params["conv3_w"], params["bn3_scale"],
                                            4, 128, 32), compute_dtype),
        "s3": jnp.asarray(np.tile(np.asarray(params["bn3_shift"], np.float32), 4)[None, :]),
        "w1r": jnp.asarray(_build_fc1(params["fc1_w"]), compute_dtype),
        "fb1": jnp.asarray(np.asarray(params["fc1_b"], np.float32)[None, :]),
        "w2p": jnp.asarray(w2p, compute_dtype),
        "fb2": jnp.asarray(fb2),
    }


# ---------------------------------------------------------------------------
# Wrapper
# ---------------------------------------------------------------------------
def _forward_impl(kp, x_nchw):
    n = x_nchw.shape[0]
    tn = min(256, ((n + 7) // 8) * 8)            # batch tile (sublane aligned)
    npad = ((n + tn - 1) // tn) * tn

    xh = jnp.transpose(x_nchw, (0, 2, 3, 1))                      # NHWC
    xh = jnp.pad(xh, ((0, npad - n), (1, 1), (0, 0), (0, 0)))     # batch + y pad
    a0 = xh.reshape(npad, A0_WIDTH).astype(jnp.bfloat16)          # (Npad, 1152)

    flops = 2 * npad * (8 * 256 * 256 + 4 * 512 * 256 + 2 * 512 * 256
                        + 2 * LANE * HID + HID * LANE)
    weight_bytes = ((256 + 512 + 512) * 256 + 2 * LANE * HID + HID * LANE) * 2 \
        + (3 * LANE + HID + LANE) * 4
    bytes_accessed = npad * A0_WIDTH * 2 + npad * LANE * 4 + weight_bytes

    out = pl.pallas_call(
        fused_forward_kernel,
        grid=(npad // tn,),
        in_specs=[
            pl.BlockSpec((tn, A0_WIDTH), lambda i: (i, 0)),       # input tile
            pl.BlockSpec((256, 2 * LANE), lambda i: (0, 0)),      # wb1
            pl.BlockSpec((1, LANE), lambda i: (0, 0)),            # shift1
            pl.BlockSpec((512, 2 * LANE), lambda i: (0, 0)),      # wb2
            pl.BlockSpec((1, LANE), lambda i: (0, 0)),            # shift2
            pl.BlockSpec((512, 2 * LANE), lambda i: (0, 0)),      # wb3
            pl.BlockSpec((1, LANE), lambda i: (0, 0)),            # shift3
            pl.BlockSpec((2 * LANE, HID), lambda i: (0, 0)),      # fc1 (regrouped)
            pl.BlockSpec((1, HID), lambda i: (0, 0)),             # fc1 bias
            pl.BlockSpec((HID, LANE), lambda i: (0, 0)),          # fc2 (lane padded)
            pl.BlockSpec((1, LANE), lambda i: (0, 0)),            # fc2 bias
        ],
        out_specs=pl.BlockSpec((tn, LANE), lambda i: (i, 0)),
        out_shape=jax.ShapeDtypeStruct((npad, LANE), jnp.float32),
        compiler_params=pltpu.CompilerParams(dimension_semantics=("parallel",)),
        cost_estimate=pl.CostEstimate(flops=flops, transcendentals=0,
                                      bytes_accessed=bytes_accessed),
    )(a0, kp["wb1"], kp["s1"], kp["wb2"], kp["s2"], kp["wb3"], kp["s3"],
      kp["w1r"], kp["fb1"], kp["w2p"], kp["fb2"])
    return out[:n, :OUT]


forward = jax.jit(_forward_impl)


# ---------------------------------------------------------------------------
# Parameter init (matches the PyTorch module's init_weights + eval-mode BN)
# ---------------------------------------------------------------------------
def xavier_uniform(key, shape, fan_in, fan_out):
    bound = (6.0 / (fan_in + fan_out)) ** 0.5
    return jax.random.uniform(key, shape, jnp.float32, -bound, bound)


def init_params(key):
    ks = jax.random.split(key, 16)
    params = {}
    chans = [(IN_C, CH[0]), (CH[0], CH[1]), (CH[1], CH[2])]
    eps = 1e-5
    for li, (cin, cout) in enumerate(chans, start=1):
        kw, kg, kb, km, kv = ks[(li - 1) * 5:(li - 1) * 5 + 5]
        w = xavier_uniform(kw, (3, 3, cin, cout), fan_in=cin * 9, fan_out=cout * 9)
        gamma = jax.random.uniform(kg, (cout,), jnp.float32, 0.5, 1.5)
        beta = 0.1 * jax.random.normal(kb, (cout,), jnp.float32)
        rmean = 0.1 * jax.random.normal(km, (cout,), jnp.float32)
        rvar = jax.random.uniform(kv, (cout,), jnp.float32, 0.5, 1.5)
        scale = gamma / jnp.sqrt(rvar + eps)
        shift = beta - rmean * scale               # conv bias is 0 per init_weights()
        params[f"conv{li}_w"] = w
        params[f"bn{li}_scale"] = scale
        params[f"bn{li}_shift"] = shift
    flat = CH[2] * 2 * 2                           # flat_input_size = 128
    params["fc1_w"] = xavier_uniform(ks[15], (flat, HID), fan_in=flat, fan_out=HID)
    params["fc1_b"] = jnp.zeros((HID,), jnp.float32)
    params["fc2_w"] = xavier_uniform(jax.random.fold_in(ks[15], 1), (HID, OUT),
                                     fan_in=HID, fan_out=OUT)
    params["fc2_b"] = jnp.zeros((OUT,), jnp.float32)
    return params


def reference_forward(params, x_nchw):
    """Plain-JAX f32 reference (lax conv / reduce_window) for the correctness check."""
    x = jnp.transpose(x_nchw, (0, 2, 3, 1))
    for li in range(1, 4):
        y = lax.conv_general_dilated(
            x, params[f"conv{li}_w"], (1, 1), "SAME",
            dimension_numbers=("NHWC", "HWIO", "NHWC"))
        y = jnp.maximum(y * params[f"bn{li}_scale"] + params[f"bn{li}_shift"], 0.0)
        x = lax.reduce_window(y, -jnp.inf, lax.max,
                              (1, 2, 2, 1), (1, 2, 2, 1), "VALID")
    n = x.shape[0]
    x_flat = jnp.transpose(x, (0, 3, 1, 2)).reshape(n, -1)
    h = jnp.maximum(x_flat @ params["fc1_w"] + params["fc1_b"], 0.0)
    return h @ params["fc2_w"] + params["fc2_b"]


if __name__ == "__main__":
    key = jax.random.PRNGKey(0)
    k_params, k_x = jax.random.split(key)
    params = init_params(k_params)
    kparams = prepare_kernel_params(params)

    # Small demo batch (required) + a multi-tile batch to exercise grid > 1 /
    # batch padding on the "parallel" grid axis.
    for n in (2, 300):
        x = jax.random.normal(jax.random.fold_in(k_x, n),
                              (n, IN_C, IN_H, IN_W), jnp.float32)
        out = jax.block_until_ready(forward(kparams, x))
        assert out.shape == (n, OUT), out.shape
        ref = reference_forward(params, x)
        err = float(jnp.max(jnp.abs(out - ref)))
        # bf16 MXU operands vs f32 reference; a real layout/weight bug would
        # produce O(1) errors at this logit scale.
        assert np.isfinite(err) and err < 0.25, err

    print("KERNEL_OK")
</pallas_src>

<mosaic_0001>
module attributes {stable_mosaic.version = 11 : i64} {
  func.func @fused_forward_kernel(%arg0: i32, %arg1: memref<8x1152xbf16, #tpu.memory_space<vmem>>, %arg2: memref<256x256xbf16, #tpu.memory_space<vmem>>, %arg3: memref<1x128xf32, #tpu.memory_space<vmem>>, %arg4: memref<512x256xbf16, #tpu.memory_space<vmem>>, %arg5: memref<1x128xf32, #tpu.memory_space<vmem>>, %arg6: memref<512x256xbf16, #tpu.memory_space<vmem>>, %arg7: memref<1x128xf32, #tpu.memory_space<vmem>>, %arg8: memref<256x32xbf16, #tpu.memory_space<vmem>>, %arg9: memref<1x32xf32, #tpu.memory_space<vmem>>, %arg10: memref<32x128xbf16, #tpu.memory_space<vmem>>, %arg11: memref<1x128xf32, #tpu.memory_space<vmem>>, %arg12: memref<8x128xf32, #tpu.memory_space<vmem>>) attributes {dimension_semantics = [#tpu.dimension_semantics<parallel>], iteration_bounds = array<i64: 1>, scalar_prefetch = 0 : i64, scratch_operands = 0 : i64, tpu.core_type = #tpu.core_type<tc>, window_params = [{transform_indices = @transform_0, window_bounds = array<i64: 8, 1152>}, {pipeline_mode = #tpu.pipeline_mode<synchronous>, transform_indices = @transform_1, window_bounds = array<i64: 256, 256>}, {pipeline_mode = #tpu.pipeline_mode<synchronous>, transform_indices = @transform_2, window_bounds = array<i64: 1, 128>}, {pipeline_mode = #tpu.pipeline_mode<synchronous>, transform_indices = @transform_3, window_bounds = array<i64: 512, 256>}, {pipeline_mode = #tpu.pipeline_mode<synchronous>, transform_indices = @transform_4, window_bounds = array<i64: 1, 128>}, {pipeline_mode = #tpu.pipeline_mode<synchronous>, transform_indices = @transform_5, window_bounds = array<i64: 512, 256>}, {pipeline_mode = #tpu.pipeline_mode<synchronous>, transform_indices = @transform_6, window_bounds = array<i64: 1, 128>}, {pipeline_mode = #tpu.pipeline_mode<synchronous>, transform_indices = @transform_7, window_bounds = array<i64: 256, 32>}, {pipeline_mode = #tpu.pipeline_mode<synchronous>, transform_indices = @transform_8, window_bounds = array<i64: 1, 32>}, {pipeline_mode = #tpu.pipeline_mode<synchronous>, transform_indices = @transform_9, window_bounds = array<i64: 32, 128>}, {pipeline_mode = #tpu.pipeline_mode<synchronous>, transform_indices = @transform_10, window_bounds = array<i64: 1, 128>}, {transform_indices = @transform_11, window_bounds = array<i64: 8, 128>}]} {
    %cst = arith.constant 0.000000e+00 : bf16
    %0 = vector.broadcast %cst : bf16 to vector<8x128xbf16>
    %c0 = arith.constant 0 : index
    %c0_0 = arith.constant 0 : index
    %1 = vector.load %arg1[%c0, %c0_0] : memref<8x1152xbf16, #tpu.memory_space<vmem>>, vector<8x1152xbf16>
    %c0_1 = arith.constant 0 : index
    %c0_2 = arith.constant 0 : index
    %2 = vector.load %arg2[%c0_1, %c0_2] : memref<256x256xbf16, #tpu.memory_space<vmem>>, vector<256x256xbf16>
    %c0_3 = arith.constant 0 : index
    %c0_4 = arith.constant 0 : index
    %3 = vector.load %arg3[%c0_3, %c0_4] : memref<1x128xf32, #tpu.memory_space<vmem>>, vector<1x128xf32>
    %4 = vector.extract_strided_slice %1 {offsets = [0, 0], sizes = [8, 256], strides = [1, 1]} : vector<8x1152xbf16> to vector<8x256xbf16>
    %cst_5 = arith.constant dense<0.000000e+00> : vector<8x256xf32>
    %5 = tpu.matmul %4, %2, %cst_5 {dimension_numbers = #tpu.dot_dimension_numbers<[1], [0], [0], [1], [0, 0, 1, 1], [], []>} : vector<8x256xbf16>, vector<256x256xbf16>, vector<8x256xf32> -> vector<8x256xf32>
    %6 = vector.extract_strided_slice %5 {offsets = [0, 0], sizes = [8, 128], strides = [1, 1]} : vector<8x256xf32> to vector<8x128xf32>
    %7 = vector.extract_strided_slice %5 {offsets = [0, 128], sizes = [8, 128], strides = [1, 1]} : vector<8x256xf32> to vector<8x128xf32>
    %8 = arith.maximumf %6, %7 : vector<8x128xf32>
    %9 = vector.broadcast %3 : vector<1x128xf32> to vector<8x128xf32>
    %10 = arith.addf %8, %9 : vector<8x128xf32>
    %cst_6 = arith.constant 0.000000e+00 : f32
    %11 = vector.broadcast %cst_6 : f32 to vector<8x128xf32>
    %12 = arith.maximumf %10, %11 : vector<8x128xf32>
    %13 = vector.extract_strided_slice %12 {offsets = [0, 8], sizes = [8, 120], strides = [1, 1]} : vector<8x128xf32> to vector<8x120xf32>
    %14 = vector.extract_strided_slice %12 {offsets = [0, 0], sizes = [8, 8], strides = [1, 1]} : vector<8x128xf32> to vector<8x8xf32>
    %15 = tpu.concatenate %13, %14 in 1 : vector<8x120xf32>, vector<8x8xf32> -> vector<8x128xf32>
    %16 = arith.maximumf %12, %15 : vector<8x128xf32>
    %17 = arith.truncf %16 : vector<8x128xf32> to vector<8x128xbf16>
    %18 = vector.extract_strided_slice %1 {offsets = [0, 128], sizes = [8, 256], strides = [1, 1]} : vector<8x1152xbf16> to vector<8x256xbf16>
    %cst_7 = arith.constant dense<0.000000e+00> : vector<8x256xf32>
    %19 = tpu.matmul %18, %2, %cst_7 {dimension_numbers = #tpu.dot_dimension_numbers<[1], [0], [0], [1], [0, 0, 1, 1], [], []>} : vector<8x256xbf16>, vector<256x256xbf16>, vector<8x256xf32> -> vector<8x256xf32>
    %20 = vector.extract_strided_slice %19 {offsets = [0, 0], sizes = [8, 128], strides = [1, 1]} : vector<8x256xf32> to vector<8x128xf32>
    %21 = vector.extract_strided_slice %19 {offsets = [0, 128], sizes = [8, 128], strides = [1, 1]} : vector<8x256xf32> to vector<8x128xf32>
    %22 = arith.maximumf %20, %21 : vector<8x128xf32>
    %23 = vector.broadcast %3 : vector<1x128xf32> to vector<8x128xf32>
    %24 = arith.addf %22, %23 : vector<8x128xf32>
    %cst_8 = arith.constant 0.000000e+00 : f32
    %25 = vector.broadcast %cst_8 : f32 to vector<8x128xf32>
    %26 = arith.maximumf %24, %25 : vector<8x128xf32>
    %27 = vector.extract_strided_slice %26 {offsets = [0, 8], sizes = [8, 120], strides = [1, 1]} : vector<8x128xf32> to vector<8x120xf32>
    %28 = vector.extract_strided_slice %26 {offsets = [0, 0], sizes = [8, 8], strides = [1, 1]} : vector<8x128xf32> to vector<8x8xf32>
    %29 = tpu.concatenate %27, %28 in 1 : vector<8x120xf32>, vector<8x8xf32> -> vector<8x128xf32>
    %30 = arith.maximumf %26, %29 : vector<8x128xf32>
    %31 = arith.truncf %30 : vector<8x128xf32> to vector<8x128xbf16>
    %32 = vector.extract_strided_slice %1 {offsets = [0, 256], sizes = [8, 256], strides = [1, 1]} : vector<8x1152xbf16> to vector<8x256xbf16>
    %cst_9 = arith.constant dense<0.000000e+00> : vector<8x256xf32>
    %33 = tpu.matmul %32, %2, %cst_9 {dimension_numbers = #tpu.dot_dimension_numbers<[1], [0], [0], [1], [0, 0, 1, 1], [], []>} : vector<8x256xbf16>, vector<256x256xbf16>, vector<8x256xf32> -> vector<8x256xf32>
    %34 = vector.extract_strided_slice %33 {offsets = [0, 0], sizes = [8, 128], strides = [1, 1]} : vector<8x256xf32> to vector<8x128xf32>
    %35 = vector.extract_strided_slice %33 {offsets = [0, 128], sizes = [8, 128], strides = [1, 1]} : vector<8x256xf32> to vector<8x128xf32>
    %36 = arith.maximumf %34, %35 : vector<8x128xf32>
    %37 = vector.broadcast %3 : vector<1x128xf32> to vector<8x128xf32>
    %38 = arith.addf %36, %37 : vector<8x128xf32>
    %cst_10 = arith.constant 0.000000e+00 : f32
    %39 = vector.broadcast %cst_10 : f32 to vector<8x128xf32>
    %40 = arith.maximumf %38, %39 : vector<8x128xf32>
    %41 = vector.extract_strided_slice %40 {offsets = [0, 8], sizes = [8, 120], strides = [1, 1]} : vector<8x128xf32> to vector<8x120xf32>
    %42 = vector.extract_strided_slice %40 {offsets = [0, 0], sizes = [8, 8], strides = [1, 1]} : vector<8x128xf32> to vector<8x8xf32>
    %43 = tpu.concatenate %41, %42 in 1 : vector<8x120xf32>, vector<8x8xf32> -> vector<8x128xf32>
    %44 = arith.maximumf %40, %43 : vector<8x128xf32>
    %45 = arith.truncf %44 : vector<8x128xf32> to vector<8x128xbf16>
    %46 = vector.extract_strided_slice %1 {offsets = [0, 384], sizes = [8, 256], strides = [1, 1]} : vector<8x1152xbf16> to vector<8x256xbf16>
    %cst_11 = arith.constant dense<0.000000e+00> : vector<8x256xf32>
    %47 = tpu.matmul %46, %2, %cst_11 {dimension_numbers = #tpu.dot_dimension_numbers<[1], [0], [0], [1], [0, 0, 1, 1], [], []>} : vector<8x256xbf16>, vector<256x256xbf16>, vector<8x256xf32> -> vector<8x256xf32>
    %48 = vector.extract_strided_slice %47 {offsets = [0, 0], sizes = [8, 128], strides = [1, 1]} : vector<8x256xf32> to vector<8x128xf32>
    %49 = vector.extract_strided_slice %47 {offsets = [0, 128], sizes = [8, 128], strides = [1, 1]} : vector<8x256xf32> to vector<8x128xf32>
    %50 = arith.maximumf %48, %49 : vector<8x128xf32>
    %51 = vector.broadcast %3 : vector<1x128xf32> to vector<8x128xf32>
    %52 = arith.addf %50, %51 : vector<8x128xf32>
    %cst_12 = arith.constant 0.000000e+00 : f32
    %53 = vector.broadcast %cst_12 : f32 to vector<8x128xf32>
    %54 = arith.maximumf %52, %53 : vector<8x128xf32>
    %55 = vector.extract_strided_slice %54 {offsets = [0, 8], sizes = [8, 120], strides = [1, 1]} : vector<8x128xf32> to vector<8x120xf32>
    %56 = vector.extract_strided_slice %54 {offsets = [0, 0], sizes = [8, 8], strides = [1, 1]} : vector<8x128xf32> to vector<8x8xf32>
    %57 = tpu.concatenate %55, %56 in 1 : vector<8x120xf32>, vector<8x8xf32> -> vector<8x128xf32>
    %58 = arith.maximumf %54, %57 : vector<8x128xf32>
    %59 = arith.truncf %58 : vector<8x128xf32> to vector<8x128xbf16>
    %60 = vector.extract_strided_slice %1 {offsets = [0, 512], sizes = [8, 256], strides = [1, 1]} : vector<8x1152xbf16> to vector<8x256xbf16>
    %cst_13 = arith.constant dense<0.000000e+00> : vector<8x256xf32>
    %61 = tpu.matmul %60, %2, %cst_13 {dimension_numbers = #tpu.dot_dimension_numbers<[1], [0], [0], [1], [0, 0, 1, 1], [], []>} : vector<8x256xbf16>, vector<256x256xbf16>, vector<8x256xf32> -> vector<8x256xf32>
    %62 = vector.extract_strided_slice %61 {offsets = [0, 0], sizes = [8, 128], strides = [1, 1]} : vector<8x256xf32> to vector<8x128xf32>
    %63 = vector.extract_strided_slice %61 {offsets = [0, 128], sizes = [8, 128], strides = [1, 1]} : vector<8x256xf32> to vector<8x128xf32>
    %64 = arith.maximumf %62, %63 : vector<8x128xf32>
    %65 = vector.broadcast %3 : vector<1x128xf32> to vector<8x128xf32>
    %66 = arith.addf %64, %65 : vector<8x128xf32>
    %cst_14 = arith.constant 0.000000e+00 : f32
    %67 = vector.broadcast %cst_14 : f32 to vector<8x128xf32>
    %68 = arith.maximumf %66, %67 : vector<8x128xf32>
    %69 = vector.extract_strided_slice %68 {offsets = [0, 8], sizes = [8, 120], strides = [1, 1]} : vector<8x128xf32> to vector<8x120xf32>
    %70 = vector.extract_strided_slice %68 {offsets = [0, 0], sizes = [8, 8], strides = [1, 1]} : vector<8x128xf32> to vector<8x8xf32>
    %71 = tpu.concatenate %69, %70 in 1 : vector<8x120xf32>, vector<8x8xf32> -> vector<8x128xf32>
    %72 = arith.maximumf %68, %71 : vector<8x128xf32>
    %73 = arith.truncf %72 : vector<8x128xf32> to vector<8x128xbf16>
    %74 = vector.extract_strided_slice %1 {offsets = [0, 640], sizes = [8, 256], strides = [1, 1]} : vector<8x1152xbf16> to vector<8x256xbf16>
    %cst_15 = arith.constant dense<0.000000e+00> : vector<8x256xf32>
    %75 = tpu.matmul %74, %2, %cst_15 {dimension_numbers = #tpu.dot_dimension_numbers<[1], [0], [0], [1], [0, 0, 1, 1], [], []>} : vector<8x256xbf16>, vector<256x256xbf16>, vector<8x256xf32> -> vector<8x256xf32>
    %76 = vector.extract_strided_slice %75 {offsets = [0, 0], sizes = [8, 128], strides = [1, 1]} : vector<8x256xf32> to vector<8x128xf32>
    %77 = vector.extract_strided_slice %75 {offsets = [0, 128], sizes = [8, 128], strides = [1, 1]} : vector<8x256xf32> to vector<8x128xf32>
    %78 = arith.maximumf %76, %77 : vector<8x128xf32>
    %79 = vector.broadcast %3 : vector<1x128xf32> to vector<8x128xf32>
    %80 = arith.addf %78, %79 : vector<8x128xf32>
    %cst_16 = arith.constant 0.000000e+00 : f32
    %81 = vector.broadcast %cst_16 : f32 to vector<8x128xf32>
    %82 = arith.maximumf %80, %81 : vector<8x128xf32>
    %83 = vector.extract_strided_slice %82 {offsets = [0, 8], sizes = [8, 120], strides = [1, 1]} : vector<8x128xf32> to vector<8x120xf32>
    %84 = vector.extract_strided_slice %82 {offsets = [0, 0], sizes = [8, 8], strides = [1, 1]} : vector<8x128xf32> to vector<8x8xf32>
    %85 = tpu.concatenate %83, %84 in 1 : vector<8x120xf32>, vector<8x8xf32> -> vector<8x128xf32>
    %86 = arith.maximumf %82, %85 : vector<8x128xf32>
    %87 = arith.truncf %86 : vector<8x128xf32> to vector<8x128xbf16>
    %88 = vector.extract_strided_slice %1 {offsets = [0, 768], sizes = [8, 256], strides = [1, 1]} : vector<8x1152xbf16> to vector<8x256xbf16>
    %cst_17 = arith.constant dense<0.000000e+00> : vector<8x256xf32>
    %89 = tpu.matmul %88, %2, %cst_17 {dimension_numbers = #tpu.dot_dimension_numbers<[1], [0], [0], [1], [0, 0, 1, 1], [], []>} : vector<8x256xbf16>, vector<256x256xbf16>, vector<8x256xf32> -> vector<8x256xf32>
    %90 = vector.extract_strided_slice %89 {offsets = [0, 0], sizes = [8, 128], strides = [1, 1]} : vector<8x256xf32> to vector<8x128xf32>
    %91 = vector.extract_strided_slice %89 {offsets = [0, 128], sizes = [8, 128], strides = [1, 1]} : vector<8x256xf32> to vector<8x128xf32>
    %92 = arith.maximumf %90, %91 : vector<8x128xf32>
    %93 = vector.broadcast %3 : vector<1x128xf32> to vector<8x128xf32>
    %94 = arith.addf %92, %93 : vector<8x128xf32>
    %cst_18 = arith.constant 0.000000e+00 : f32
    %95 = vector.broadcast %cst_18 : f32 to vector<8x128xf32>
    %96 = arith.maximumf %94, %95 : vector<8x128xf32>
    %97 = vector.extract_strided_slice %96 {offsets = [0, 8], sizes = [8, 120], strides = [1, 1]} : vector<8x128xf32> to vector<8x120xf32>
    %98 = vector.extract_strided_slice %96 {offsets = [0, 0], sizes = [8, 8], strides = [1, 1]} : vector<8x128xf32> to vector<8x8xf32>
    %99 = tpu.concatenate %97, %98 in 1 : vector<8x120xf32>, vector<8x8xf32> -> vector<8x128xf32>
    %100 = arith.maximumf %96, %99 : vector<8x128xf32>
    %101 = arith.truncf %100 : vector<8x128xf32> to vector<8x128xbf16>
    %102 = vector.extract_strided_slice %1 {offsets = [0, 896], sizes = [8, 256], strides = [1, 1]} : vector<8x1152xbf16> to vector<8x256xbf16>
    %cst_19 = arith.constant dense<0.000000e+00> : vector<8x256xf32>
    %103 = tpu.matmul %102, %2, %cst_19 {dimension_numbers = #tpu.dot_dimension_numbers<[1], [0], [0], [1], [0, 0, 1, 1], [], []>} : vector<8x256xbf16>, vector<256x256xbf16>, vector<8x256xf32> -> vector<8x256xf32>
    %104 = vector.extract_strided_slice %103 {offsets = [0, 0], sizes = [8, 128], strides = [1, 1]} : vector<8x256xf32> to vector<8x128xf32>
    %105 = vector.extract_strided_slice %103 {offsets = [0, 128], sizes = [8, 128], strides = [1, 1]} : vector<8x256xf32> to vector<8x128xf32>
    %106 = arith.maximumf %104, %105 : vector<8x128xf32>
    %107 = vector.broadcast %3 : vector<1x128xf32> to vector<8x128xf32>
    %108 = arith.addf %106, %107 : vector<8x128xf32>
    %cst_20 = arith.constant 0.000000e+00 : f32
    %109 = vector.broadcast %cst_20 : f32 to vector<8x128xf32>
    %110 = arith.maximumf %108, %109 : vector<8x128xf32>
    %111 = vector.extract_strided_slice %110 {offsets = [0, 8], sizes = [8, 120], strides = [1, 1]} : vector<8x128xf32> to vector<8x120xf32>
    %112 = vector.extract_strided_slice %110 {offsets = [0, 0], sizes = [8, 8], strides = [1, 1]} : vector<8x128xf32> to vector<8x8xf32>
    %113 = tpu.concatenate %111, %112 in 1 : vector<8x120xf32>, vector<8x8xf32> -> vector<8x128xf32>
    %114 = arith.maximumf %110, %113 : vector<8x128xf32>
    %115 = arith.truncf %114 : vector<8x128xf32> to vector<8x128xbf16>
    %116 = tpu.concatenate %0, %17, %31, %45, %59, %73, %87, %101, %115, %0 in 1 : vector<8x128xbf16>, vector<8x128xbf16>, vector<8x128xbf16>, vector<8x128xbf16>, vector<8x128xbf16>, vector<8x128xbf16>, vector<8x128xbf16>, vector<8x128xbf16>, vector<8x128xbf16>, vector<8x128xbf16> -> vector<8x1280xbf16>
    %c0_21 = arith.constant 0 : index
    %c0_22 = arith.constant 0 : index
    %117 = vector.load %arg4[%c0_21, %c0_22] : memref<512x256xbf16, #tpu.memory_space<vmem>>, vector<512x256xbf16>
    %c0_23 = arith.constant 0 : index
    %c0_24 = arith.constant 0 : index
    %118 = vector.load %arg5[%c0_23, %c0_24] : memref<1x128xf32, #tpu.memory_space<vmem>>, vector<1x128xf32>
    %119 = vector.extract_strided_slice %116 {offsets = [0, 0], sizes = [8, 512], strides = [1, 1]} : vector<8x1280xbf16> to vector<8x512xbf16>
    %cst_25 = arith.constant dense<0.000000e+00> : vector<8x256xf32>
    %120 = tpu.matmul %119, %117, %cst_25 {dimension_numbers = #tpu.dot_dimension_numbers<[1], [0], [0], [1], [0, 0, 1, 1], [], []>} : vector<8x512xbf16>, vector<512x256xbf16>, vector<8x256xf32> -> vector<8x256xf32>
    %121 = vector.extract_strided_slice %120 {offsets = [0, 0], sizes = [8, 128], strides = [1, 1]} : vector<8x256xf32> to vector<8x128xf32>
    %122 = vector.extract_strided_slice %120 {offsets = [0, 128], sizes = [8, 128], strides = [1, 1]} : vector<8x256xf32> to vector<8x128xf32>
    %123 = arith.maximumf %121, %122 : vector<8x128xf32>
    %124 = vector.broadcast %118 : vector<1x128xf32> to vector<8x128xf32>
    %125 = arith.addf %123, %124 : vector<8x128xf32>
    %cst_26 = arith.constant 0.000000e+00 : f32
    %126 = vector.broadcast %cst_26 : f32 to vector<8x128xf32>
    %127 = arith.maximumf %125, %126 : vector<8x128xf32>
    %128 = vector.extract_strided_slice %127 {offsets = [0, 16], sizes = [8, 112], strides = [1, 1]} : vector<8x128xf32> to vector<8x112xf32>
    %129 = vector.extract_strided_slice %127 {offsets = [0, 0], sizes = [8, 16], strides = [1, 1]} : vector<8x128xf32> to vector<8x16xf32>
    %130 = tpu.concatenate %128, %129 in 1 : vector<8x112xf32>, vector<8x16xf32> -> vector<8x128xf32>
    %131 = arith.maximumf %127, %130 : vector<8x128xf32>
    %132 = arith.truncf %131 : vector<8x128xf32> to vector<8x128xbf16>
    %133 = vector.extract_strided_slice %116 {offsets = [0, 256], sizes = [8, 512], strides = [1, 1]} : vector<8x1280xbf16> to vector<8x512xbf16>
    %cst_27 = arith.constant dense<0.000000e+00> : vector<8x256xf32>
    %134 = tpu.matmul %133, %117, %cst_27 {dimension_numbers = #tpu.dot_dimension_numbers<[1], [0], [0], [1], [0, 0, 1, 1], [], []>} : vector<8x512xbf16>, vector<512x256xbf16>, vector<8x256xf32> -> vector<8x256xf32>
    %135 = vector.extract_strided_slice %134 {offsets = [0, 0], sizes = [8, 128], strides = [1, 1]} : vector<8x256xf32> to vector<8x128xf32>
    %136 = vector.extract_strided_slice %134 {offsets = [0, 128], sizes = [8, 128], strides = [1, 1]} : vector<8x256xf32> to vector<8x128xf32>
    %137 = arith.maximumf %135, %136 : vector<8x128xf32>
    %138 = vector.broadcast %118 : vector<1x128xf32> to vector<8x128xf32>
    %139 = arith.addf %137, %138 : vector<8x128xf32>
    %cst_28 = arith.constant 0.000000e+00 : f32
    %140 = vector.broadcast %cst_28 : f32 to vector<8x128xf32>
    %141 = arith.maximumf %139, %140 : vector<8x128xf32>
    %142 = vector.extract_strided_slice %141 {offsets = [0, 16], sizes = [8, 112], strides = [1, 1]} : vector<8x128xf32> to vector<8x112xf32>
    %143 = vector.extract_strided_slice %141 {offsets = [0, 0], sizes = [8, 16], strides = [1, 1]} : vector<8x128xf32> to vector<8x16xf32>
    %144 = tpu.concatenate %142, %143 in 1 : vector<8x112xf32>, vector<8x16xf32> -> vector<8x128xf32>
    %145 = arith.maximumf %141, %144 : vector<8x128xf32>
    %146 = arith.truncf %145 : vector<8x128xf32> to vector<8x128xbf16>
    %147 = vector.extract_strided_slice %116 {offsets = [0, 512], sizes = [8, 512], strides = [1, 1]} : vector<8x1280xbf16> to vector<8x512xbf16>
    %cst_29 = arith.constant dense<0.000000e+00> : vector<8x256xf32>
    %148 = tpu.matmul %147, %117, %cst_29 {dimension_numbers = #tpu.dot_dimension_numbers<[1], [0], [0], [1], [0, 0, 1, 1], [], []>} : vector<8x512xbf16>, vector<512x256xbf16>, vector<8x256xf32> -> vector<8x256xf32>
    %149 = vector.extract_strided_slice %148 {offsets = [0, 0], sizes = [8, 128], strides = [1, 1]} : vector<8x256xf32> to vector<8x128xf32>
    %150 = vector.extract_strided_slice %148 {offsets = [0, 128], sizes = [8, 128], strides = [1, 1]} : vector<8x256xf32> to vector<8x128xf32>
    %151 = arith.maximumf %149, %150 : vector<8x128xf32>
    %152 = vector.broadcast %118 : vector<1x128xf32> to vector<8x128xf32>
    %153 = arith.addf %151, %152 : vector<8x128xf32>
    %cst_30 = arith.constant 0.000000e+00 : f32
    %154 = vector.broadcast %cst_30 : f32 to vector<8x128xf32>
    %155 = arith.maximumf %153, %154 : vector<8x128xf32>
    %156 = vector.extract_strided_slice %155 {offsets = [0, 16], sizes = [8, 112], strides = [1, 1]} : vector<8x128xf32> to vector<8x112xf32>
    %157 = vector.extract_strided_slice %155 {offsets = [0, 0], sizes = [8, 16], strides = [1, 1]} : vector<8x128xf32> to vector<8x16xf32>
    %158 = tpu.concatenate %156, %157 in 1 : vector<8x112xf32>, vector<8x16xf32> -> vector<8x128xf32>
    %159 = arith.maximumf %155, %158 : vector<8x128xf32>
    %160 = arith.truncf %159 : vector<8x128xf32> to vector<8x128xbf16>
    %161 = vector.extract_strided_slice %116 {offsets = [0, 768], sizes = [8, 512], strides = [1, 1]} : vector<8x1280xbf16> to vector<8x512xbf16>
    %cst_31 = arith.constant dense<0.000000e+00> : vector<8x256xf32>
    %162 = tpu.matmul %161, %117, %cst_31 {dimension_numbers = #tpu.dot_dimension_numbers<[1], [0], [0], [1], [0, 0, 1, 1], [], []>} : vector<8x512xbf16>, vector<512x256xbf16>, vector<8x256xf32> -> vector<8x256xf32>
    %163 = vector.extract_strided_slice %162 {offsets = [0, 0], sizes = [8, 128], strides = [1, 1]} : vector<8x256xf32> to vector<8x128xf32>
    %164 = vector.extract_strided_slice %162 {offsets = [0, 128], sizes = [8, 128], strides = [1, 1]} : vector<8x256xf32> to vector<8x128xf32>
    %165 = arith.maximumf %163, %164 : vector<8x128xf32>
    %166 = vector.broadcast %118 : vector<1x128xf32> to vector<8x128xf32>
    %167 = arith.addf %165, %166 : vector<8x128xf32>
    %cst_32 = arith.constant 0.000000e+00 : f32
    %168 = vector.broadcast %cst_32 : f32 to vector<8x128xf32>
    %169 = arith.maximumf %167, %168 : vector<8x128xf32>
    %170 = vector.extract_strided_slice %169 {offsets = [0, 16], sizes = [8, 112], strides = [1, 1]} : vector<8x128xf32> to vector<8x112xf32>
    %171 = vector.extract_strided_slice %169 {offsets = [0, 0], sizes = [8, 16], strides = [1, 1]} : vector<8x128xf32> to vector<8x16xf32>
    %172 = tpu.concatenate %170, %171 in 1 : vector<8x112xf32>, vector<8x16xf32> -> vector<8x128xf32>
    %173 = arith.maximumf %169, %172 : vector<8x128xf32>
    %174 = arith.truncf %173 : vector<8x128xf32> to vector<8x128xbf16>
    %175 = tpu.concatenate %0, %132, %146, %160, %174, %0 in 1 : vector<8x128xbf16>, vector<8x128xbf16>, vector<8x128xbf16>, vector<8x128xbf16>, vector<8x128xbf16>, vector<8x128xbf16> -> vector<8x768xbf16>
    %c0_33 = arith.constant 0 : index
    %c0_34 = arith.constant 0 : index
    %176 = vector.load %arg6[%c0_33, %c0_34] : memref<512x256xbf16, #tpu.memory_space<vmem>>, vector<512x256xbf16>
    %c0_35 = arith.constant 0 : index
    %c0_36 = arith.constant 0 : index
    %177 = vector.load %arg7[%c0_35, %c0_36] : memref<1x128xf32, #tpu.memory_space<vmem>>, vector<1x128xf32>
    %178 = vector.extract_strided_slice %175 {offsets = [0, 0], sizes = [8, 512], strides = [1, 1]} : vector<8x768xbf16> to vector<8x512xbf16>
    %cst_37 = arith.constant dense<0.000000e+00> : vector<8x256xf32>
    %179 = tpu.matmul %178, %176, %cst_37 {dimension_numbers = #tpu.dot_dimension_numbers<[1], [0], [0], [1], [0, 0, 1, 1], [], []>} : vector<8x512xbf16>, vector<512x256xbf16>, vector<8x256xf32> -> vector<8x256xf32>
    %180 = vector.extract_strided_slice %179 {offsets = [0, 0], sizes = [8, 128], strides = [1, 1]} : vector<8x256xf32> to vector<8x128xf32>
    %181 = vector.extract_strided_slice %179 {offsets = [0, 128], sizes = [8, 128], strides = [1, 1]} : vector<8x256xf32> to vector<8x128xf32>
    %182 = arith.maximumf %180, %181 : vector<8x128xf32>
    %183 = vector.broadcast %177 : vector<1x128xf32> to vector<8x128xf32>
    %184 = arith.addf %182, %183 : vector<8x128xf32>
    %cst_38 = arith.constant 0.000000e+00 : f32
    %185 = vector.broadcast %cst_38 : f32 to vector<8x128xf32>
    %186 = arith.maximumf %184, %185 : vector<8x128xf32>
    %187 = vector.extract_strided_slice %186 {offsets = [0, 32], sizes = [8, 96], strides = [1, 1]} : vector<8x128xf32> to vector<8x96xf32>
    %188 = vector.extract_strided_slice %186 {offsets = [0, 0], sizes = [8, 32], strides = [1, 1]} : vector<8x128xf32> to vector<8x32xf32>
    %189 = tpu.concatenate %187, %188 in 1 : vector<8x96xf32>, vector<8x32xf32> -> vector<8x128xf32>
    %190 = arith.maximumf %186, %189 : vector<8x128xf32>
    %191 = arith.truncf %190 : vector<8x128xf32> to vector<8x128xbf16>
    %192 = vector.extract_strided_slice %175 {offsets = [0, 256], sizes = [8, 512], strides = [1, 1]} : vector<8x768xbf16> to vector<8x512xbf16>
    %cst_39 = arith.constant dense<0.000000e+00> : vector<8x256xf32>
    %193 = tpu.matmul %192, %176, %cst_39 {dimension_numbers = #tpu.dot_dimension_numbers<[1], [0], [0], [1], [0, 0, 1, 1], [], []>} : vector<8x512xbf16>, vector<512x256xbf16>, vector<8x256xf32> -> vector<8x256xf32>
    %194 = vector.extract_strided_slice %193 {offsets = [0, 0], sizes = [8, 128], strides = [1, 1]} : vector<8x256xf32> to vector<8x128xf32>
    %195 = vector.extract_strided_slice %193 {offsets = [0, 128], sizes = [8, 128], strides = [1, 1]} : vector<8x256xf32> to vector<8x128xf32>
    %196 = arith.maximumf %194, %195 : vector<8x128xf32>
    %197 = vector.broadcast %177 : vector<1x128xf32> to vector<8x128xf32>
    %198 = arith.addf %196, %197 : vector<8x128xf32>
    %cst_40 = arith.constant 0.000000e+00 : f32
    %199 = vector.broadcast %cst_40 : f32 to vector<8x128xf32>
    %200 = arith.maximumf %198, %199 : vector<8x128xf32>
    %201 = vector.extract_strided_slice %200 {offsets = [0, 32], sizes = [8, 96], strides = [1, 1]} : vector<8x128xf32> to vector<8x96xf32>
    %202 = vector.extract_strided_slice %200 {offsets = [0, 0], sizes = [8, 32], strides = [1, 1]} : vector<8x128xf32> to vector<8x32xf32>
    %203 = tpu.concatenate %201, %202 in 1 : vector<8x96xf32>, vector<8x32xf32> -> vector<8x128xf32>
    %204 = arith.maximumf %200, %203 : vector<8x128xf32>
    %205 = arith.truncf %204 : vector<8x128xf32> to vector<8x128xbf16>
    %206 = tpu.concatenate %191, %205 in 1 : vector<8x128xbf16>, vector<8x128xbf16> -> vector<8x256xbf16>
    %c0_41 = arith.constant 0 : index
    %c0_42 = arith.constant 0 : index
    %207 = vector.load %arg8[%c0_41, %c0_42] : memref<256x32xbf16, #tpu.memory_space<vmem>>, vector<256x32xbf16>
    %cst_43 = arith.constant dense<0.000000e+00> : vector<8x32xf32>
    %208 = tpu.matmul %206, %207, %cst_43 {dimension_numbers = #tpu.dot_dimension_numbers<[1], [0], [0], [1], [0, 0, 1, 1], [], []>} : vector<8x256xbf16>, vector<256x32xbf16>, vector<8x32xf32> -> vector<8x32xf32>
    %c0_44 = arith.constant 0 : index
    %c0_45 = arith.constant 0 : index
    %209 = vector.load %arg9[%c0_44, %c0_45] : memref<1x32xf32, #tpu.memory_space<vmem>>, vector<1x32xf32>
    %210 = vector.broadcast %209 : vector<1x32xf32> to vector<8x32xf32>
    %211 = arith.addf %208, %210 : vector<8x32xf32>
    %cst_46 = arith.constant 0.000000e+00 : f32
    %212 = vector.broadcast %cst_46 : f32 to vector<8x32xf32>
    %213 = arith.maximumf %211, %212 : vector<8x32xf32>
    %214 = arith.truncf %213 : vector<8x32xf32> to vector<8x32xbf16>
    %c0_47 = arith.constant 0 : index
    %c0_48 = arith.constant 0 : index
    %215 = vector.load %arg10[%c0_47, %c0_48] : memref<32x128xbf16, #tpu.memory_space<vmem>>, vector<32x128xbf16>
    %cst_49 = arith.constant dense<0.000000e+00> : vector<8x128xf32>
    %216 = tpu.matmul %214, %215, %cst_49 {dimension_numbers = #tpu.dot_dimension_numbers<[1], [0], [0], [1], [0, 0, 1, 1], [], []>} : vector<8x32xbf16>, vector<32x128xbf16>, vector<8x128xf32> -> vector<8x128xf32>
    %c0_50 = arith.constant 0 : index
    %c0_51 = arith.constant 0 : index
    %217 = vector.load %arg11[%c0_50, %c0_51] : memref<1x128xf32, #tpu.memory_space<vmem>>, vector<1x128xf32>
    %218 = vector.broadcast %217 : vector<1x128xf32> to vector<8x128xf32>
    %219 = arith.addf %216, %218 : vector<8x128xf32>
    %c0_52 = arith.constant 0 : index
    %c0_53 = arith.constant 0 : index
    %220 = vector.load %arg12[%c0_52, %c0_53] : memref<8x128xf32, #tpu.memory_space<vmem>>, vector<8x128xf32>
    tpu.vector_store %arg12[%c0_52, %c0_53], %219 {strides = array<i32>} : memref<8x128xf32, #tpu.memory_space<vmem>>, vector<8x128xf32>,
    return
  }
  func.func @transform_0(%arg0: i32) -> (i32, i32) {
    %c0_i32 = arith.constant 0 : i32
    %c0_i32_0 = arith.constant 0 : i32
    return %arg0, %c0_i32 : i32, i32
  }
  func.func @transform_1(%arg0: i32) -> (i32, i32) {
    %c0_i32 = arith.constant 0 : i32
    %c0_i32_0 = arith.constant 0 : i32
    %c0_i32_1 = arith.constant 0 : i32
    return %c0_i32, %c0_i32_0 : i32, i32
  }
  func.func @transform_2(%arg0: i32) -> (i32, i32) {
    %c0_i32 = arith.constant 0 : i32
    %c0_i32_0 = arith.constant 0 : i32
    %c0_i32_1 = arith.constant 0 : i32
    return %c0_i32, %c0_i32_0 : i32, i32
  }
  func.func @transform_3(%arg0: i32) -> (i32, i32) {
    %c0_i32 = arith.constant 0 : i32
    %c0_i32_0 = arith.constant 0 : i32
    %c0_i32_1 = arith.constant 0 : i32
    return %c0_i32, %c0_i32_0 : i32, i32
  }
  func.func @transform_4(%arg0: i32) -> (i32, i32) {
    %c0_i32 = arith.constant 0 : i32
    %c0_i32_0 = arith.constant 0 : i32
    %c0_i32_1 = arith.constant 0 : i32
    return %c0_i32, %c0_i32_0 : i32, i32
  }
  func.func @transform_5(%arg0: i32) -> (i32, i32) {
    %c0_i32 = arith.constant 0 : i32
    %c0_i32_0 = arith.constant 0 : i32
    %c0_i32_1 = arith.constant 0 : i32
    return %c0_i32, %c0_i32_0 : i32, i32
  }
  func.func @transform_6(%arg0: i32) -> (i32, i32) {
    %c0_i32 = arith.constant 0 : i32
    %c0_i32_0 = arith.constant 0 : i32
    %c0_i32_1 = arith.constant 0 : i32
    return %c0_i32, %c0_i32_0 : i32, i32
  }
  func.func @transform_7(%arg0: i32) -> (i32, i32) {
    %c0_i32 = arith.constant 0 : i32
    %c0_i32_0 = arith.constant 0 : i32
    %c0_i32_1 = arith.constant 0 : i32
    return %c0_i32, %c0_i32_0 : i32, i32
  }
  func.func @transform_8(%arg0: i32) -> (i32, i32) {
    %c0_i32 = arith.constant 0 : i32
    %c0_i32_0 = arith.constant 0 : i32
    %c0_i32_1 = arith.constant 0 : i32
    return %c0_i32, %c0_i32_0 : i32, i32
  }
  func.func @transform_9(%arg0: i32) -> (i32, i32) {
    %c0_i32 = arith.constant 0 : i32
    %c0_i32_0 = arith.constant 0 : i32
    %c0_i32_1 = arith.constant 0 : i32
    return %c0_i32, %c0_i32_0 : i32, i32
  }
  func.func @transform_10(%arg0: i32) -> (i32, i32) {
    %c0_i32 = arith.constant 0 : i32
    %c0_i32_0 = arith.constant 0 : i32
    %c0_i32_1 = arith.constant 0 : i32
    return %c0_i32, %c0_i32_0 : i32, i32
  }
  func.func @transform_11(%arg0: i32) -> (i32, i32) {
    %c0_i32 = arith.constant 0 : i32
    %c0_i32_0 = arith.constant 0 : i32
    return %arg0, %c0_i32 : i32, i32
  }
}

</mosaic_0001>

<llo_original>
// kernel: _forward_impl.1
$region0: #{_forward_impl.1}
  #allocation0 [shape = 'u32[]', space=smem, size = 0x4, offset = 0x4, fixed_abs, tag = 'smem constant byte address 0x4 - core index']
  #allocation1 [shape = 'u32[144,128]{1,0:T(1,128)}', space=vmem, size = 0x12000, scoped, tag = 'internal scratch']
  %s0 = inlined_call_operand.vmem [shape: bf16[8,1152], index: 0, kind: input, shape index: {}]
  %s1 = inlined_call_operand.vmem [shape: bf16[256,256], index: 1, kind: input, shape index: {}]
  %s2 = inlined_call_operand.vmem [shape: f32[1,128], index: 2, kind: input, shape index: {}]
  %s3 = inlined_call_operand.vmem [shape: bf16[512,256], index: 3, kind: input, shape index: {}]
  %s4 = inlined_call_operand.vmem [shape: f32[1,128], index: 4, kind: input, shape index: {}]
  %s5 = inlined_call_operand.vmem [shape: bf16[512,256], index: 5, kind: input, shape index: {}]
  %s6 = inlined_call_operand.vmem [shape: f32[1,128], index: 6, kind: input, shape index: {}]
  %s7 = inlined_call_operand.vmem [shape: bf16[256,32], index: 7, kind: input, shape index: {}]
  %s8 = inlined_call_operand.vmem [shape: f32[1,32], index: 8, kind: input, shape index: {}]
  %s9 = inlined_call_operand.vmem [shape: bf16[32,128], index: 9, kind: input, shape index: {}]
  %s10 = inlined_call_operand.vmem [shape: f32[1,128], index: 10, kind: input, shape index: {}]
  %s11 = inlined_call_operand.vmem [shape: f32[8,128], index: 11, kind: output, shape index: {}]
  %s12 = sld [smem:[#allocation0]]
  $region54: #{_forward_impl.1} parent=0
    _
  %s14 = ssub.s32 1, %s12
  %s15 = scalar_select 0, %s14, %s12
  // Predicated region
  $region2: #{_forward_impl.1} parent=0 // pred_check
    _
  $region3: #{_forward_impl.1} parent=0 // pred_check_branch
    %17 = sbr.rel (0) target = $region5
  $region4: #{_forward_impl.1} parent=0 // pred_region
    _
  $region5: #{_forward_impl.1} parent=0 // pred_fallthru
    _
  // Predicated region
  $region6: #{_forward_impl.1} parent=0 // pred_check
    _
  $region7: #{_forward_impl.1} parent=0 // pred_check_branch
    %19 = sbr.rel (0) target = $region9
  $region8: #{_forward_impl.1} parent=0 // pred_region
    _
  $region9: #{_forward_impl.1} parent=0 // pred_fallthru
    _
  // Predicated region
  $region10: #{_forward_impl.1} parent=0 // pred_check
    _
  $region11: #{_forward_impl.1} parent=0 // pred_check_branch
    %21 = sbr.rel (0) target = $region13
  $region12: #{_forward_impl.1} parent=0 // pred_region
    _
  $region13: #{_forward_impl.1} parent=0 // pred_fallthru
    _
  // Predicated region
  $region14: #{_forward_impl.1} parent=0 // pred_check
    _
  $region15: #{_forward_impl.1} parent=0 // pred_check_branch
    %23 = sbr.rel (0) target = $region17
  $region16: #{_forward_impl.1} parent=0 // pred_region
    _
  $region17: #{_forward_impl.1} parent=0 // pred_fallthru
    _
  // Predicated region
  $region18: #{_forward_impl.1} parent=0 // pred_check
    _
  $region19: #{_forward_impl.1} parent=0 // pred_check_branch
    %25 = sbr.rel (0) target = $region21
  $region20: #{_forward_impl.1} parent=0 // pred_region
    _
  $region21: #{_forward_impl.1} parent=0 // pred_fallthru
    _
  // Predicated region
  $region22: #{_forward_impl.1} parent=0 // pred_check
    _
  $region23: #{_forward_impl.1} parent=0 // pred_check_branch
    %27 = sbr.rel (0) target = $region25
  $region24: #{_forward_impl.1} parent=0 // pred_region
    _
  $region25: #{_forward_impl.1} parent=0 // pred_fallthru
    _
  // Predicated region
  $region26: #{_forward_impl.1} parent=0 // pred_check
    _
  $region27: #{_forward_impl.1} parent=0 // pred_check_branch
    %29 = sbr.rel (0) target = $region29
  $region28: #{_forward_impl.1} parent=0 // pred_region
    _
  $region29: #{_forward_impl.1} parent=0 // pred_fallthru
    _
  // Predicated region
  $region30: #{_forward_impl.1} parent=0 // pred_check
    _
  $region31: #{_forward_impl.1} parent=0 // pred_check_branch
    %31 = sbr.rel (0) target = $region33
  $region32: #{_forward_impl.1} parent=0 // pred_region
    _
  $region33: #{_forward_impl.1} parent=0 // pred_fallthru
    _
  // Predicated region
  $region34: #{_forward_impl.1} parent=0 // pred_check
    _
  $region35: #{_forward_impl.1} parent=0 // pred_check_branch
    %33 = sbr.rel (0) target = $region37
  $region36: #{_forward_impl.1} parent=0 // pred_region
    _
  $region37: #{_forward_impl.1} parent=0 // pred_fallthru
    _
  // Predicated region
  $region38: #{_forward_impl.1} parent=0 // pred_check
    _
  $region39: #{_forward_impl.1} parent=0 // pred_check_branch
    %35 = sbr.rel (0) target = $region41
  $region40: #{_forward_impl.1} parent=0 // pred_region
    _
  $region41: #{_forward_impl.1} parent=0 // pred_fallthru
    _
  // Predicated region
  $region42: #{_forward_impl.1} parent=0 // pred_check
    _
  $region43: #{_forward_impl.1} parent=0 // pred_check_branch
    %37 = sbr.rel (0) target = $region45
  $region44: #{_forward_impl.1} parent=0 // pred_region
    _
  $region45: #{_forward_impl.1} parent=0 // pred_fallthru
    _
  %v39 = vld [vmem:[%s0] sm:$0xff]
  %v40 = vld [vmem:[%s0 + $0x8] sm:$0xff]
  %v41 = vld [vmem:[%s0 + $0x10] sm:$0xff]
  %v42 = vld [vmem:[%s0 + $0x18] sm:$0xff]
  %v43 = vld [vmem:[%s0 + $0x20] sm:$0xf]
  %v44 = vld [vmem:[%s1] sm:$0xff]
  %v45 = vld [vmem:[%s1 + $0x8] sm:$0xff]
  %v46 = vld [vmem:[%s1 + $0x10] sm:$0xff]
  %v47 = vld [vmem:[%s1 + $0x18] sm:$0xff]
  %v48 = vld [vmem:[%s1 + $0x20] sm:$0xff]
  %v49 = vld [vmem:[%s1 + $0x28] sm:$0xff]
  %v50 = vld [vmem:[%s1 + $0x30] sm:$0xff]
  %v51 = vld [vmem:[%s1 + $0x38] sm:$0xff]
  %v52 = vld [vmem:[%s1 + $0x40] sm:$0xff]
  %v53 = vld [vmem:[%s1 + $0x48] sm:$0xff]
  %v54 = vld [vmem:[%s1 + $0x50] sm:$0xff]
  %v55 = vld [vmem:[%s1 + $0x58] sm:$0xff]
  %v56 = vld [vmem:[%s1 + $0x60] sm:$0xff]
  %v57 = vld [vmem:[%s1 + $0x68] sm:$0xff]
  %v58 = vld [vmem:[%s1 + $0x70] sm:$0xff]
  %v59 = vld [vmem:[%s1 + $0x78] sm:$0xff]
  %v60 = vld [vmem:[%s1 + $0x80] sm:$0xff]
  %v61 = vld [vmem:[%s1 + $0x88] sm:$0xff]
  %v62 = vld [vmem:[%s1 + $0x90] sm:$0xff]
  %v63 = vld [vmem:[%s1 + $0x98] sm:$0xff]
  %v64 = vld [vmem:[%s1 + $0xa0] sm:$0xff]
  %v65 = vld [vmem:[%s1 + $0xa8] sm:$0xff]
  %v66 = vld [vmem:[%s1 + $0xb0] sm:$0xff]
  %v67 = vld [vmem:[%s1 + $0xb8] sm:$0xff]
  %v68 = vld [vmem:[%s1 + $0xc0] sm:$0xff]
  %v69 = vld [vmem:[%s1 + $0xc8] sm:$0xff]
  %v70 = vld [vmem:[%s1 + $0xd0] sm:$0xff]
  %v71 = vld [vmem:[%s1 + $0xd8] sm:$0xff]
  %v72 = vld [vmem:[%s1 + $0xe0] sm:$0xff]
  %v73 = vld [vmem:[%s1 + $0xe8] sm:$0xff]
  %v74 = vld [vmem:[%s1 + $0xf0] sm:$0xff]
  %v75 = vld [vmem:[%s1 + $0xf8] sm:$0xff]
  %v76 = vld [vmem:[%s2] sm:$0x1]
  %v78 = vunpack.c.l.b16 %v39
  %v79 = vunpack.c.h.b16 %v39
  %v80 = vpack.c.b16 %v78, %v78
  %v81 = vpack.c.b16 %v79, %v79
  %v116 = vunpack.c.l.b16 %v44
  %v117 = vunpack.c.h.b16 %v44
  %v118 = vunpack.c.l.b16 %v45
  %v119 = vunpack.c.h.b16 %v45
  %v120 = vunpack.c.l.b16 %v46
  %v121 = vunpack.c.h.b16 %v46
  %v122 = vunpack.c.l.b16 %v47
  %v123 = vunpack.c.h.b16 %v47
  %v124 = vunpack.c.l.b16 %v48
  %v125 = vunpack.c.h.b16 %v48
  %v126 = vunpack.c.l.b16 %v49
  %v127 = vunpack.c.h.b16 %v49
  %v128 = vunpack.c.l.b16 %v50
  %v129 = vunpack.c.h.b16 %v50
  %v130 = vunpack.c.l.b16 %v51
  %v131 = vunpack.c.h.b16 %v51
  %v132 = vunpack.c.l.b16 %v52
  %v133 = vunpack.c.h.b16 %v52
  %v134 = vunpack.c.l.b16 %v53
  %v135 = vunpack.c.h.b16 %v53
  %v136 = vunpack.c.l.b16 %v54
  %v137 = vunpack.c.h.b16 %v54
  %v138 = vunpack.c.l.b16 %v55
  %v139 = vunpack.c.h.b16 %v55
  %v140 = vunpack.c.l.b16 %v56
  %v141 = vunpack.c.h.b16 %v56
  %v142 = vunpack.c.l.b16 %v57
  %v143 = vunpack.c.h.b16 %v57
  %v144 = vunpack.c.l.b16 %v58
  %v145 = vunpack.c.h.b16 %v58
  %v146 = vunpack.c.l.b16 %v59
  %v147 = vunpack.c.h.b16 %v59
  %v148 = vunpack.c.l.b16 %v60
  %v149 = vunpack.c.h.b16 %v60
  %v150 = vunpack.c.l.b16 %v61
  %v151 = vunpack.c.h.b16 %v61
  %v152 = vunpack.c.l.b16 %v62
  %v153 = vunpack.c.h.b16 %v62
  %v154 = vunpack.c.l.b16 %v63
  %v155 = vunpack.c.h.b16 %v63
  %v156 = vunpack.c.l.b16 %v64
  %v157 = vunpack.c.h.b16 %v64
  %v158 = vunpack.c.l.b16 %v65
  %v159 = vunpack.c.h.b16 %v65
  %v160 = vunpack.c.l.b16 %v66
  %v161 = vunpack.c.h.b16 %v66
  %v162 = vunpack.c.l.b16 %v67
  %v163 = vunpack.c.h.b16 %v67
  %v164 = vunpack.c.l.b16 %v68
  %v165 = vunpack.c.h.b16 %v68
  %v166 = vunpack.c.l.b16 %v69
  %v167 = vunpack.c.h.b16 %v69
  %v168 = vunpack.c.l.b16 %v70
  %v169 = vunpack.c.h.b16 %v70
  %v170 = vunpack.c.l.b16 %v71
  %v171 = vunpack.c.h.b16 %v71
  %v172 = vunpack.c.l.b16 %v72
  %v173 = vunpack.c.h.b16 %v72
  %v174 = vunpack.c.l.b16 %v73
  %v175 = vunpack.c.h.b16 %v73
  %v176 = vunpack.c.l.b16 %v74
  %v177 = vunpack.c.h.b16 %v74
  %v178 = vunpack.c.l.b16 %v75
  %v179 = vunpack.c.h.b16 %v75
  %v180 = vpack.c.b16 %v118, %v116
  %v181 = vpack.c.b16 %v119, %v117
  %v182 = vpack.c.b16 %v122, %v120
  %v183 = vpack.c.b16 %v123, %v121
  %v184 = vpack.c.b16 %v126, %v124
  %v185 = vpack.c.b16 %v127, %v125
  %v186 = vpack.c.b16 %v130, %v128
  %v187 = vpack.c.b16 %v131, %v129
  %v188 = vpack.c.b16 %v134, %v132
  %v189 = vpack.c.b16 %v135, %v133
  %v190 = vpack.c.b16 %v138, %v136
  %v191 = vpack.c.b16 %v139, %v137
  %v192 = vpack.c.b16 %v142, %v140
  %v193 = vpack.c.b16 %v143, %v141
  %v194 = vpack.c.b16 %v146, %v144
  %v195 = vpack.c.b16 %v147, %v145
  %v196 = vpack.c.b16 %v150, %v148
  %v197 = vpack.c.b16 %v151, %v149
  %v198 = vpack.c.b16 %v154, %v152
  %v199 = vpack.c.b16 %v155, %v153
  %v200 = vpack.c.b16 %v158, %v156
  %v201 = vpack.c.b16 %v159, %v157
  %v202 = vpack.c.b16 %v162, %v160
  %v203 = vpack.c.b16 %v163, %v161
  %v204 = vpack.c.b16 %v166, %v164
  %v205 = vpack.c.b16 %v167, %v165
  %v206 = vpack.c.b16 %v170, %v168
  %v207 = vpack.c.b16 %v171, %v169
  %v208 = vpack.c.b16 %v174, %v172
  %v209 = vpack.c.b16 %v175, %v173
  %v210 = vpack.c.b16 %v178, %v176
  %v211 = vpack.c.b16 %v179, %v177
  %244 = vmatprep.subr.bf16.mxu0 %v181
  %245 = vmatpush1.bf16.msra.mxu0 %v180
  %246 = vmatprep.subr.bf16.mxu0 %v183
  %247 = vmatpush1.bf16.msra.mxu0 %v182
  %248 = vmatprep.subr.bf16.mxu0 %v185
  %249 = vmatpush1.bf16.msra.mxu0 %v184
  %250 = vmatprep.subr.bf16.mxu0 %v187
  %251 = vmatpush1.bf16.msra.mxu0 %v186
  %252 = vmatprep.subr.bf16.mxu0 %v189
  %253 = vmatpush1.bf16.msra.mxu0 %v188
  %254 = vmatprep.subr.bf16.mxu0 %v191
  %255 = vmatpush1.bf16.msra.mxu0 %v190
  %256 = vmatprep.subr.bf16.mxu0 %v193
  %257 = vmatpush1.bf16.msra.mxu0 %v192
  %258 = vmatprep.subr.bf16.mxu0 %v195
  %259 = vmatpush1.bf16.msra.mxu0 %v194
  %260 = vmatprep.subr.bf16.mxu0 %v197
  %261 = vmatpush1.bf16.msra.mxu0 %v196
  %262 = vmatprep.subr.bf16.mxu0 %v199
  %263 = vmatpush1.bf16.msra.mxu0 %v198
  %264 = vmatprep.subr.bf16.mxu0 %v201
  %265 = vmatpush1.bf16.msra.mxu0 %v200
  %266 = vmatprep.subr.bf16.mxu0 %v203
  %267 = vmatpush1.bf16.msra.mxu0 %v202
  %268 = vmatprep.subr.bf16.mxu0 %v205
  %269 = vmatpush1.bf16.msra.mxu0 %v204
  %270 = vmatprep.subr.bf16.mxu0 %v207
  %271 = vmatpush1.bf16.msra.mxu0 %v206
  %272 = vmatprep.subr.bf16.mxu0 %v209
  %273 = vmatpush1.bf16.msra.mxu0 %v208
  %274 = vmatprep.subr.bf16.mxu0 %v211
  %275 = vmatpush1.bf16.msra.mxu0 %v210
  %276 = vmatprep.mubr.bf16.mxu0 %v81
  %277 = vmatmul.mubr.bf16.gmra.mrb[0].mxu0 %v80
  %v278 = vpop.f32.mrb[0].mxu0
  %v279 = vadd.f32 0.0, %v278
  %v280 = vpop.f32.mrb[0].mxu0
  %v281 = vadd.f32 0.0, %v280
  %v282 = vpop.f32.mrb[0].mxu0
  %v283 = vpop.f32.mrb[0].mxu0
  %284 = vdwg.mxu0
  %v285 = vmax.f32 %v279, %v281
  %v287 = vlaneseq
  %v288 = vshrl.u32 %v287, 7
  %v289 = vsub.s32 0, %v288
  %v290 = vrot.slane %v76, %v289
  %v292 = vadd.f32 %v285, %v290
  %v293 = vmax.f32 %v292, 0.0
  %295 = vrot.lane.b32.xlu0 %v293, 120
  %v296 = vpop.permute.xlu0 %295
  %v298 = vmax.f32 %v293, %v296
  %v299 = vpack.c.bf16 %v298, %v298
  %v301 = vunpack.c.l.b16 %v40
  %v302 = vpack.c.b16 %v301, %v301
  %304 = vmatprep.subr.bf16.mxu0 %v181
  %305 = vmatpush1.bf16.msra.mxu0 %v180
  %306 = vmatprep.subr.bf16.mxu0 %v183
  %307 = vmatpush1.bf16.msra.mxu0 %v182
  %308 = vmatprep.subr.bf16.mxu0 %v185
  %309 = vmatpush1.bf16.msra.mxu0 %v184
  %310 = vmatprep.subr.bf16.mxu0 %v187
  %311 = vmatpush1.bf16.msra.mxu0 %v186
  %312 = vmatprep.subr.bf16.mxu0 %v189
  %313 = vmatpush1.bf16.msra.mxu0 %v188
  %314 = vmatprep.subr.bf16.mxu0 %v191
  %315 = vmatpush1.bf16.msra.mxu0 %v190
  %316 = vmatprep.subr.bf16.mxu0 %v193
  %317 = vmatpush1.bf16.msra.mxu0 %v192
  %318 = vmatprep.subr.bf16.mxu0 %v195
  %319 = vmatpush1.bf16.msra.mxu0 %v194
  %320 = vmatprep.subr.bf16.mxu0 %v197
  %321 = vmatpush1.bf16.msra.mxu0 %v196
  %322 = vmatprep.subr.bf16.mxu0 %v199
  %323 = vmatpush1.bf16.msra.mxu0 %v198
  %324 = vmatprep.subr.bf16.mxu0 %v201
  %325 = vmatpush1.bf16.msra.mxu0 %v200
  %326 = vmatprep.subr.bf16.mxu0 %v203
  %327 = vmatpush1.bf16.msra.mxu0 %v202
  %328 = vmatprep.subr.bf16.mxu0 %v205
  %329 = vmatpush1.bf16.msra.mxu0 %v204
  %330 = vmatprep.subr.bf16.mxu0 %v207
  %331 = vmatpush1.bf16.msra.mxu0 %v206
  %332 = vmatprep.subr.bf16.mxu0 %v209
  %333 = vmatpush1.bf16.msra.mxu0 %v208
  %334 = vmatprep.subr.bf16.mxu0 %v211
  %335 = vmatpush1.bf16.msra.mxu0 %v210
  %336 = vmatprep.mubr.bf16.mxu0 %v302
  %337 = vmatmul.mubr.bf16.gmra.mrb[0].mxu0 %v81
  %v338 = vpop.f32.mrb[0].mxu0
  %v339 = vadd.f32 0.0, %v338
  %v340 = vpop.f32.mrb[0].mxu0
  %v341 = vadd.f32 0.0, %v340
  %v342 = vpop.f32.mrb[0].mxu0
  %v343 = vpop.f32.mrb[0].mxu0
  %344 = vdwg.mxu0
  %v345 = vmax.f32 %v339, %v341
  %v346 = vadd.f32 %v345, %v290
  %v347 = vmax.f32 %v346, 0.0
  %349 = vrot.lane.b32.xlu0 %v347, 120
  %v350 = vpop.permute.xlu0 %349
  %v352 = vmax.f32 %v347, %v350
  %v353 = vpack.c.bf16 %v352, %v352
  %v354 = vunpack.c.h.b16 %v40
  %v355 = vpack.c.b16 %v354, %v354
  %357 = vmatprep.subr.bf16.mxu0 %v181
  %358 = vmatpush1.bf16.msra.mxu0 %v180
  %359 = vmatprep.subr.bf16.mxu0 %v183
  %360 = vmatpush1.bf16.msra.mxu0 %v182
  %361 = vmatprep.subr.bf16.mxu0 %v185
  %362 = vmatpush1.bf16.msra.mxu0 %v184
  %363 = vmatprep.subr.bf16.mxu0 %v187
  %364 = vmatpush1.bf16.msra.mxu0 %v186
  %365 = vmatprep.subr.bf16.mxu0 %v189
  %366 = vmatpush1.bf16.msra.mxu0 %v188
  %367 = vmatprep.subr.bf16.mxu0 %v191
  %368 = vmatpush1.bf16.msra.mxu0 %v190
  %369 = vmatprep.subr.bf16.mxu0 %v193
  %370 = vmatpush1.bf16.msra.mxu0 %v192
  %371 = vmatprep.subr.bf16.mxu0 %v195
  %372 = vmatpush1.bf16.msra.mxu0 %v194
  %373 = vmatprep.subr.bf16.mxu0 %v197
  %374 = vmatpush1.bf16.msra.mxu0 %v196
  %375 = vmatprep.subr.bf16.mxu0 %v199
  %376 = vmatpush1.bf16.msra.mxu0 %v198
  %377 = vmatprep.subr.bf16.mxu0 %v201
  %378 = vmatpush1.bf16.msra.mxu0 %v200
  %379 = vmatprep.subr.bf16.mxu0 %v203
  %380 = vmatpush1.bf16.msra.mxu0 %v202
  %381 = vmatprep.subr.bf16.mxu0 %v205
  %382 = vmatpush1.bf16.msra.mxu0 %v204
  %383 = vmatprep.subr.bf16.mxu0 %v207
  %384 = vmatpush1.bf16.msra.mxu0 %v206
  %385 = vmatprep.subr.bf16.mxu0 %v209
  %386 = vmatpush1.bf16.msra.mxu0 %v208
  %387 = vmatprep.subr.bf16.mxu0 %v211
  %388 = vmatpush1.bf16.msra.mxu0 %v210
  %389 = vmatprep.mubr.bf16.mxu0 %v355
  %390 = vmatmul.mubr.bf16.gmra.mrb[0].mxu0 %v302
  %v391 = vpop.f32.mrb[0].mxu0
  %v392 = vadd.f32 0.0, %v391
  %v393 = vpop.f32.mrb[0].mxu0
  %v394 = vadd.f32 0.0, %v393
  %v395 = vpop.f32.mrb[0].mxu0
  %v396 = vpop.f32.mrb[0].mxu0
  %397 = vdwg.mxu0
  %v398 = vmax.f32 %v392, %v394
  %v399 = vadd.f32 %v398, %v290
  %v400 = vmax.f32 %v399, 0.0
  %402 = vrot.lane.b32.xlu0 %v400, 120
  %v403 = vpop.permute.xlu0 %402
  %v405 = vmax.f32 %v400, %v403
  %v406 = vpack.c.bf16 %v405, %v405
  %v408 = vunpack.c.l.b16 %v41
  %v409 = vpack.c.b16 %v408, %v408
  %411 = vmatprep.subr.bf16.mxu0 %v181
  %412 = vmatpush1.bf16.msra.mxu0 %v180
  %413 = vmatprep.subr.bf16.mxu0 %v183
  %414 = vmatpush1.bf16.msra.mxu0 %v182
  %415 = vmatprep.subr.bf16.mxu0 %v185
  %416 = vmatpush1.bf16.msra.mxu0 %v184
  %417 = vmatprep.subr.bf16.mxu0 %v187
  %418 = vmatpush1.bf16.msra.mxu0 %v186
  %419 = vmatprep.subr.bf16.mxu0 %v189
  %420 = vmatpush1.bf16.msra.mxu0 %v188
  %421 = vmatprep.subr.bf16.mxu0 %v191
  %422 = vmatpush1.bf16.msra.mxu0 %v190
  %423 = vmatprep.subr.bf16.mxu0 %v193
  %424 = vmatpush1.bf16.msra.mxu0 %v192
  %425 = vmatprep.subr.bf16.mxu0 %v195
  %426 = vmatpush1.bf16.msra.mxu0 %v194
  %427 = vmatprep.subr.bf16.mxu0 %v197
  %428 = vmatpush1.bf16.msra.mxu0 %v196
  %429 = vmatprep.subr.bf16.mxu0 %v199
  %430 = vmatpush1.bf16.msra.mxu0 %v198
  %431 = vmatprep.subr.bf16.mxu0 %v201
  %432 = vmatpush1.bf16.msra.mxu0 %v200
  %433 = vmatprep.subr.bf16.mxu0 %v203
  %434 = vmatpush1.bf16.msra.mxu0 %v202
  %435 = vmatprep.subr.bf16.mxu0 %v205
  %436 = vmatpush1.bf16.msra.mxu0 %v204
  %437 = vmatprep.subr.bf16.mxu0 %v207
  %438 = vmatpush1.bf16.msra.mxu0 %v206
  %439 = vmatprep.subr.bf16.mxu0 %v209
  %440 = vmatpush1.bf16.msra.mxu0 %v208
  %441 = vmatprep.subr.bf16.mxu0 %v211
  %442 = vmatpush1.bf16.msra.mxu0 %v210
  %443 = vmatprep.mubr.bf16.mxu0 %v409
  %444 = vmatmul.mubr.bf16.gmra.mrb[0].mxu0 %v355
  %v445 = vpop.f32.mrb[0].mxu0
  %v446 = vadd.f32 0.0, %v445
  %v447 = vpop.f32.mrb[0].mxu0
  %v448 = vadd.f32 0.0, %v447
  %v449 = vpop.f32.mrb[0].mxu0
  %v450 = vpop.f32.mrb[0].mxu0
  %451 = vdwg.mxu0
  %v452 = vmax.f32 %v446, %v448
  %v453 = vadd.f32 %v452, %v290
  %v454 = vmax.f32 %v453, 0.0
  %456 = vrot.lane.b32.xlu0 %v454, 120
  %v457 = vpop.permute.xlu0 %456
  %v459 = vmax.f32 %v454, %v457
  %v460 = vpack.c.bf16 %v459, %v459
  %v461 = vunpack.c.h.b16 %v41
  %v462 = vpack.c.b16 %v461, %v461
  %464 = vmatprep.subr.bf16.mxu0 %v181
  %465 = vmatpush1.bf16.msra.mxu0 %v180
  %466 = vmatprep.subr.bf16.mxu0 %v183
  %467 = vmatpush1.bf16.msra.mxu0 %v182
  %468 = vmatprep.subr.bf16.mxu0 %v185
  %469 = vmatpush1.bf16.msra.mxu0 %v184
  %470 = vmatprep.subr.bf16.mxu0 %v187
  %471 = vmatpush1.bf16.msra.mxu0 %v186
  %472 = vmatprep.subr.bf16.mxu0 %v189
  %473 = vmatpush1.bf16.msra.mxu0 %v188
  %474 = vmatprep.subr.bf16.mxu0 %v191
  %475 = vmatpush1.bf16.msra.mxu0 %v190
  %476 = vmatprep.subr.bf16.mxu0 %v193
  %477 = vmatpush1.bf16.msra.mxu0 %v192
  %478 = vmatprep.subr.bf16.mxu0 %v195
  %479 = vmatpush1.bf16.msra.mxu0 %v194
  %480 = vmatprep.subr.bf16.mxu0 %v197
  %481 = vmatpush1.bf16.msra.mxu0 %v196
  %482 = vmatprep.subr.bf16.mxu0 %v199
  %483 = vmatpush1.bf16.msra.mxu0 %v198
  %484 = vmatprep.subr.bf16.mxu0 %v201
  %485 = vmatpush1.bf16.msra.mxu0 %v200
  %486 = vmatprep.subr.bf16.mxu0 %v203
  %487 = vmatpush1.bf16.msra.mxu0 %v202
  %488 = vmatprep.subr.bf16.mxu0 %v205
  %489 = vmatpush1.bf16.msra.mxu0 %v204
  %490 = vmatprep.subr.bf16.mxu0 %v207
  %491 = vmatpush1.bf16.msra.mxu0 %v206
  %492 = vmatprep.subr.bf16.mxu0 %v209
  %493 = vmatpush1.bf16.msra.mxu0 %v208
  %494 = vmatprep.subr.bf16.mxu0 %v211
  %495 = vmatpush1.bf16.msra.mxu0 %v210
  %496 = vmatprep.mubr.bf16.mxu0 %v462
  %497 = vmatmul.mubr.bf16.gmra.mrb[0].mxu0 %v409
  %v498 = vpop.f32.mrb[0].mxu0
  %v499 = vadd.f32 0.0, %v498
  %v500 = vpop.f32.mrb[0].mxu0
  %v501 = vadd.f32 0.0, %v500
  %v502 = vpop.f32.mrb[0].mxu0
  %v503 = vpop.f32.mrb[0].mxu0
  %504 = vdwg.mxu0
  %v505 = vmax.f32 %v499, %v501
  %v506 = vadd.f32 %v505, %v290
  %v507 = vmax.f32 %v506, 0.0
  %509 = vrot.lane.b32.xlu0 %v507, 120
  %v510 = vpop.permute.xlu0 %509
  %v512 = vmax.f32 %v507, %v510
  %v513 = vpack.c.bf16 %v512, %v512
  %v515 = vunpack.c.l.b16 %v42
  %v516 = vpack.c.b16 %v515, %v515
  %518 = vmatprep.subr.bf16.mxu0 %v181
  %519 = vmatpush1.bf16.msra.mxu0 %v180
  %520 = vmatprep.subr.bf16.mxu0 %v183
  %521 = vmatpush1.bf16.msra.mxu0 %v182
  %522 = vmatprep.subr.bf16.mxu0 %v185
  %523 = vmatpush1.bf16.msra.mxu0 %v184
  %524 = vmatprep.subr.bf16.mxu0 %v187
  %525 = vmatpush1.bf16.msra.mxu0 %v186
  %526 = vmatprep.subr.bf16.mxu0 %v189
  %527 = vmatpush1.bf16.msra.mxu0 %v188
  %528 = vmatprep.subr.bf16.mxu0 %v191
  %529 = vmatpush1.bf16.msra.mxu0 %v190
  %530 = vmatprep.subr.bf16.mxu0 %v193
  %531 = vmatpush1.bf16.msra.mxu0 %v192
  %532 = vmatprep.subr.bf16.mxu0 %v195
  %533 = vmatpush1.bf16.msra.mxu0 %v194
  %534 = vmatprep.subr.bf16.mxu0 %v197
  %535 = vmatpush1.bf16.msra.mxu0 %v196
  %536 = vmatprep.subr.bf16.mxu0 %v199
  %537 = vmatpush1.bf16.msra.mxu0 %v198
  %538 = vmatprep.subr.bf16.mxu0 %v201
  %539 = vmatpush1.bf16.msra.mxu0 %v200
  %540 = vmatprep.subr.bf16.mxu0 %v203
  %541 = vmatpush1.bf16.msra.mxu0 %v202
  %542 = vmatprep.subr.bf16.mxu0 %v205
  %543 = vmatpush1.bf16.msra.mxu0 %v204
  %544 = vmatprep.subr.bf16.mxu0 %v207
  %545 = vmatpush1.bf16.msra.mxu0 %v206
  %546 = vmatprep.subr.bf16.mxu0 %v209
  %547 = vmatpush1.bf16.msra.mxu0 %v208
  %548 = vmatprep.subr.bf16.mxu0 %v211
  %549 = vmatpush1.bf16.msra.mxu0 %v210
  %550 = vmatprep.mubr.bf16.mxu0 %v516
  %551 = vmatmul.mubr.bf16.gmra.mrb[0].mxu0 %v462
  %v552 = vpop.f32.mrb[0].mxu0
  %v553 = vadd.f32 0.0, %v552
  %v554 = vpop.f32.mrb[0].mxu0
  %v555 = vadd.f32 0.0, %v554
  %v556 = vpop.f32.mrb[0].mxu0
  %v557 = vpop.f32.mrb[0].mxu0
  %558 = vdwg.mxu0
  %v559 = vmax.f32 %v553, %v555
  %v560 = vadd.f32 %v559, %v290
  %v561 = vmax.f32 %v560, 0.0
  %563 = vrot.lane.b32.xlu0 %v561, 120
  %v564 = vpop.permute.xlu0 %563
  %v566 = vmax.f32 %v561, %v564
  %v567 = vpack.c.bf16 %v566, %v566
  %v568 = vunpack.c.h.b16 %v42
  %v569 = vpack.c.b16 %v568, %v568
  %571 = vmatprep.subr.bf16.mxu0 %v181
  %572 = vmatpush1.bf16.msra.mxu0 %v180
  %573 = vmatprep.subr.bf16.mxu0 %v183
  %574 = vmatpush1.bf16.msra.mxu0 %v182
  %575 = vmatprep.subr.bf16.mxu0 %v185
  %576 = vmatpush1.bf16.msra.mxu0 %v184
  %577 = vmatprep.subr.bf16.mxu0 %v187
  %578 = vmatpush1.bf16.msra.mxu0 %v186
  %579 = vmatprep.subr.bf16.mxu0 %v189
  %580 = vmatpush1.bf16.msra.mxu0 %v188
  %581 = vmatprep.subr.bf16.mxu0 %v191
  %582 = vmatpush1.bf16.msra.mxu0 %v190
  %583 = vmatprep.subr.bf16.mxu0 %v193
  %584 = vmatpush1.bf16.msra.mxu0 %v192
  %585 = vmatprep.subr.bf16.mxu0 %v195
  %586 = vmatpush1.bf16.msra.mxu0 %v194
  %587 = vmatprep.subr.bf16.mxu0 %v197
  %588 = vmatpush1.bf16.msra.mxu0 %v196
  %589 = vmatprep.subr.bf16.mxu0 %v199
  %590 = vmatpush1.bf16.msra.mxu0 %v198
  %591 = vmatprep.subr.bf16.mxu0 %v201
  %592 = vmatpush1.bf16.msra.mxu0 %v200
  %593 = vmatprep.subr.bf16.mxu0 %v203
  %594 = vmatpush1.bf16.msra.mxu0 %v202
  %595 = vmatprep.subr.bf16.mxu0 %v205
  %596 = vmatpush1.bf16.msra.mxu0 %v204
  %597 = vmatprep.subr.bf16.mxu0 %v207
  %598 = vmatpush1.bf16.msra.mxu0 %v206
  %599 = vmatprep.subr.bf16.mxu0 %v209
  %600 = vmatpush1.bf16.msra.mxu0 %v208
  %601 = vmatprep.subr.bf16.mxu0 %v211
  %602 = vmatpush1.bf16.msra.mxu0 %v210
  %603 = vmatprep.mubr.bf16.mxu0 %v569
  %604 = vmatmul.mubr.bf16.gmra.mrb[0].mxu0 %v516
  %v605 = vpop.f32.mrb[0].mxu0
  %v606 = vadd.f32 0.0, %v605
  %v607 = vpop.f32.mrb[0].mxu0
  %v608 = vadd.f32 0.0, %v607
  %v609 = vpop.f32.mrb[0].mxu0
  %v610 = vpop.f32.mrb[0].mxu0
  %611 = vdwg.mxu0
  %v612 = vmax.f32 %v606, %v608
  %v613 = vadd.f32 %v612, %v290
  %v614 = vmax.f32 %v613, 0.0
  %616 = vrot.lane.b32.xlu0 %v614, 120
  %v617 = vpop.permute.xlu0 %616
  %v619 = vmax.f32 %v614, %v617
  %v620 = vpack.c.bf16 %v619, %v619
  %v622 = vunpack.c.l.b16 %v43
  %v623 = vpack.c.b16 %v622, %v622
  %625 = vmatprep.subr.bf16.mxu0 %v181
  %626 = vmatpush1.bf16.msra.mxu0 %v180
  %627 = vmatprep.subr.bf16.mxu0 %v183
  %628 = vmatpush1.bf16.msra.mxu0 %v182
  %629 = vmatprep.subr.bf16.mxu0 %v185
  %630 = vmatpush1.bf16.msra.mxu0 %v184
  %631 = vmatprep.subr.bf16.mxu0 %v187
  %632 = vmatpush1.bf16.msra.mxu0 %v186
  %633 = vmatprep.subr.bf16.mxu0 %v189
  %634 = vmatpush1.bf16.msra.mxu0 %v188
  %635 = vmatprep.subr.bf16.mxu0 %v191
  %636 = vmatpush1.bf16.msra.mxu0 %v190
  %637 = vmatprep.subr.bf16.mxu0 %v193
  %638 = vmatpush1.bf16.msra.mxu0 %v192
  %639 = vmatprep.subr.bf16.mxu0 %v195
  %640 = vmatpush1.bf16.msra.mxu0 %v194
  %641 = vmatprep.subr.bf16.mxu0 %v197
  %642 = vmatpush1.bf16.msra.mxu0 %v196
  %643 = vmatprep.subr.bf16.mxu0 %v199
  %644 = vmatpush1.bf16.msra.mxu0 %v198
  %645 = vmatprep.subr.bf16.mxu0 %v201
  %646 = vmatpush1.bf16.msra.mxu0 %v200
  %647 = vmatprep.subr.bf16.mxu0 %v203
  %648 = vmatpush1.bf16.msra.mxu0 %v202
  %649 = vmatprep.subr.bf16.mxu0 %v205
  %650 = vmatpush1.bf16.msra.mxu0 %v204
  %651 = vmatprep.subr.bf16.mxu0 %v207
  %652 = vmatpush1.bf16.msra.mxu0 %v206
  %653 = vmatprep.subr.bf16.mxu0 %v209
  %654 = vmatpush1.bf16.msra.mxu0 %v208
  %655 = vmatprep.subr.bf16.mxu0 %v211
  %656 = vmatpush1.bf16.msra.mxu0 %v210
  %657 = vmatprep.mubr.bf16.mxu0 %v623
  %658 = vmatmul.mubr.bf16.gmra.mrb[0].mxu0 %v569
  %v659 = vpop.f32.mrb[0].mxu0
  %v660 = vadd.f32 0.0, %v659
  %v661 = vpop.f32.mrb[0].mxu0
  %v662 = vadd.f32 0.0, %v661
  %v663 = vpop.f32.mrb[0].mxu0
  %v664 = vpop.f32.mrb[0].mxu0
  %665 = vdwg.mxu0
  %v666 = vmax.f32 %v660, %v662
  %v667 = vadd.f32 %v666, %v290
  %v668 = vmax.f32 %v667, 0.0
  %670 = vrot.lane.b32.xlu0 %v668, 120
  %v671 = vpop.permute.xlu0 %670
  %v673 = vmax.f32 %v668, %v671
  %v674 = vpack.c.bf16 %v673, %v673
  %v675 = vld [vmem:[%s3] sm:$0xff]
  %v676 = vld [vmem:[%s3 + $0x8] sm:$0xff]
  %v677 = vld [vmem:[%s3 + $0x10] sm:$0xff]
  %v678 = vld [vmem:[%s3 + $0x18] sm:$0xff]
  %v679 = vld [vmem:[%s3 + $0x20] sm:$0xff]
  %v680 = vld [vmem:[%s3 + $0x28] sm:$0xff]
  %v681 = vld [vmem:[%s3 + $0x30] sm:$0xff]
  %v682 = vld [vmem:[%s3 + $0x38] sm:$0xff]
  %v683 = vld [vmem:[%s3 + $0x40] sm:$0xff]
  %v684 = vld [vmem:[%s3 + $0x48] sm:$0xff]
  %v685 = vld [vmem:[%s3 + $0x50] sm:$0xff]
  %v686 = vld [vmem:[%s3 + $0x58] sm:$0xff]
  %v687 = vld [vmem:[%s3 + $0x60] sm:$0xff]
  %v688 = vld [vmem:[%s3 + $0x68] sm:$0xff]
  %v689 = vld [vmem:[%s3 + $0x70] sm:$0xff]
  %v690 = vld [vmem:[%s3 + $0x78] sm:$0xff]
  %v691 = vld [vmem:[%s3 + $0x80] sm:$0xff]
  %v692 = vld [vmem:[%s3 + $0x88] sm:$0xff]
  %v693 = vld [vmem:[%s3 + $0x90] sm:$0xff]
  %v694 = vld [vmem:[%s3 + $0x98] sm:$0xff]
  %v695 = vld [vmem:[%s3 + $0xa0] sm:$0xff]
  %v696 = vld [vmem:[%s3 + $0xa8] sm:$0xff]
  %v697 = vld [vmem:[%s3 + $0xb0] sm:$0xff]
  %v698 = vld [vmem:[%s3 + $0xb8] sm:$0xff]
  %v699 = vld [vmem:[%s3 + $0xc0] sm:$0xff]
  %v700 = vld [vmem:[%s3 + $0xc8] sm:$0xff]
  %v701 = vld [vmem:[%s3 + $0xd0] sm:$0xff]
  %v702 = vld [vmem:[%s3 + $0xd8] sm:$0xff]
  %v703 = vld [vmem:[%s3 + $0xe0] sm:$0xff]
  %v704 = vld [vmem:[%s3 + $0xe8] sm:$0xff]
  %v705 = vld [vmem:[%s3 + $0xf0] sm:$0xff]
  %v706 = vld [vmem:[%s3 + $0xf8] sm:$0xff]
  %v707 = vld [vmem:[%s3 + $0x100] sm:$0xff]
  %v708 = vld [vmem:[%s3 + $0x108] sm:$0xff]
  %v709 = vld [vmem:[%s3 + $0x110] sm:$0xff]
  %v710 = vld [vmem:[%s3 + $0x118] sm:$0xff]
  %v711 = vld [vmem:[%s3 + $0x120] sm:$0xff]
  %v712 = vld [vmem:[%s3 + $0x128] sm:$0xff]
  %v713 = vld [vmem:[%s3 + $0x130] sm:$0xff]
  %v714 = vld [vmem:[%s3 + $0x138] sm:$0xff]
  %v715 = vld [vmem:[%s3 + $0x140] sm:$0xff]
  %v716 = vld [vmem:[%s3 + $0x148] sm:$0xff]
  %v717 = vld [vmem:[%s3 + $0x150] sm:$0xff]
  %v718 = vld [vmem:[%s3 + $0x158] sm:$0xff]
  %v719 = vld [vmem:[%s3 + $0x160] sm:$0xff]
  %v720 = vld [vmem:[%s3 + $0x168] sm:$0xff]
  %v721 = vld [vmem:[%s3 + $0x170] sm:$0xff]
  %v722 = vld [vmem:[%s3 + $0x178] sm:$0xff]
  %v723 = vld [vmem:[%s3 + $0x180] sm:$0xff]
  %v724 = vld [vmem:[%s3 + $0x188] sm:$0xff]
  %v725 = vld [vmem:[%s3 + $0x190] sm:$0xff]
  %v726 = vld [vmem:[%s3 + $0x198] sm:$0xff]
  %v727 = vld [vmem:[%s3 + $0x1a0] sm:$0xff]
  %v728 = vld [vmem:[%s3 + $0x1a8] sm:$0xff]
  %v729 = vld [vmem:[%s3 + $0x1b0] sm:$0xff]
  %v730 = vld [vmem:[%s3 + $0x1b8] sm:$0xff]
  %v731 = vld [vmem:[%s3 + $0x1c0] sm:$0xff]
  %v732 = vld [vmem:[%s3 + $0x1c8] sm:$0xff]
  %v733 = vld [vmem:[%s3 + $0x1d0] sm:$0xff]
  %v734 = vld [vmem:[%s3 + $0x1d8] sm:$0xff]
  %v735 = vld [vmem:[%s3 + $0x1e0] sm:$0xff]
  %v736 = vld [vmem:[%s3 + $0x1e8] sm:$0xff]
  %v737 = vld [vmem:[%s3 + $0x1f0] sm:$0xff]
  %v738 = vld [vmem:[%s3 + $0x1f8] sm:$0xff]
  %v739 = vld [vmem:[%s4] sm:$0x1]
  %v804 = vunpack.c.l.b16 %v675
  %v805 = vunpack.c.h.b16 %v675
  %v806 = vunpack.c.l.b16 %v676
  %v807 = vunpack.c.h.b16 %v676
  %v808 = vunpack.c.l.b16 %v677
  %v809 = vunpack.c.h.b16 %v677
  %v810 = vunpack.c.l.b16 %v678
  %v811 = vunpack.c.h.b16 %v678
  %v812 = vunpack.c.l.b16 %v679
  %v813 = vunpack.c.h.b16 %v679
  %v814 = vunpack.c.l.b16 %v680
  %v815 = vunpack.c.h.b16 %v680
  %v816 = vunpack.c.l.b16 %v681
  %v817 = vunpack.c.h.b16 %v681
  %v818 = vunpack.c.l.b16 %v682
  %v819 = vunpack.c.h.b16 %v682
  %v820 = vunpack.c.l.b16 %v683
  %v821 = vunpack.c.h.b16 %v683
  %v822 = vunpack.c.l.b16 %v684
  %v823 = vunpack.c.h.b16 %v684
  %v824 = vunpack.c.l.b16 %v685
  %v825 = vunpack.c.h.b16 %v685
  %v826 = vunpack.c.l.b16 %v686
  %v827 = vunpack.c.h.b16 %v686
  %v828 = vunpack.c.l.b16 %v687
  %v829 = vunpack.c.h.b16 %v687
  %v830 = vunpack.c.l.b16 %v688
  %v831 = vunpack.c.h.b16 %v688
  %v832 = vunpack.c.l.b16 %v689
  %v833 = vunpack.c.h.b16 %v689
  %v834 = vunpack.c.l.b16 %v690
  %v835 = vunpack.c.h.b16 %v690
  %v836 = vunpack.c.l.b16 %v691
  %v837 = vunpack.c.h.b16 %v691
  %v838 = vunpack.c.l.b16 %v692
  %v839 = vunpack.c.h.b16 %v692
  %v840 = vunpack.c.l.b16 %v693
  %v841 = vunpack.c.h.b16 %v693
  %v842 = vunpack.c.l.b16 %v694
  %v843 = vunpack.c.h.b16 %v694
  %v844 = vunpack.c.l.b16 %v695
  %v845 = vunpack.c.h.b16 %v695
  %v846 = vunpack.c.l.b16 %v696
  %v847 = vunpack.c.h.b16 %v696
  %v848 = vunpack.c.l.b16 %v697
  %v849 = vunpack.c.h.b16 %v697
  %v850 = vunpack.c.l.b16 %v698
  %v851 = vunpack.c.h.b16 %v698
  %v852 = vunpack.c.l.b16 %v699
  %v853 = vunpack.c.h.b16 %v699
  %v854 = vunpack.c.l.b16 %v700
  %v855 = vunpack.c.h.b16 %v700
  %v856 = vunpack.c.l.b16 %v701
  %v857 = vunpack.c.h.b16 %v701
  %v858 = vunpack.c.l.b16 %v702
  %v859 = vunpack.c.h.b16 %v702
  %v860 = vunpack.c.l.b16 %v703
  %v861 = vunpack.c.h.b16 %v703
  %v862 = vunpack.c.l.b16 %v704
  %v863 = vunpack.c.h.b16 %v704
  %v864 = vunpack.c.l.b16 %v705
  %v865 = vunpack.c.h.b16 %v705
  %v866 = vunpack.c.l.b16 %v706
  %v867 = vunpack.c.h.b16 %v706
  %v868 = vunpack.c.l.b16 %v707
  %v869 = vunpack.c.h.b16 %v707
  %v870 = vunpack.c.l.b16 %v708
  %v871 = vunpack.c.h.b16 %v708
  %v872 = vunpack.c.l.b16 %v709
  %v873 = vunpack.c.h.b16 %v709
  %v874 = vunpack.c.l.b16 %v710
  %v875 = vunpack.c.h.b16 %v710
  %v876 = vunpack.c.l.b16 %v711
  %v877 = vunpack.c.h.b16 %v711
  %v878 = vunpack.c.l.b16 %v712
  %v879 = vunpack.c.h.b16 %v712
  %v880 = vunpack.c.l.b16 %v713
  %v881 = vunpack.c.h.b16 %v713
  %v882 = vunpack.c.l.b16 %v714
  %v883 = vunpack.c.h.b16 %v714
  %v884 = vunpack.c.l.b16 %v715
  %v885 = vunpack.c.h.b16 %v715
  %v886 = vunpack.c.l.b16 %v716
  %v887 = vunpack.c.h.b16 %v716
  %v888 = vunpack.c.l.b16 %v717
  %v889 = vunpack.c.h.b16 %v717
  %v890 = vunpack.c.l.b16 %v718
  %v891 = vunpack.c.h.b16 %v718
  %v892 = vunpack.c.l.b16 %v719
  %v893 = vunpack.c.h.b16 %v719
  %v894 = vunpack.c.l.b16 %v720
  %v895 = vunpack.c.h.b16 %v720
  %v896 = vunpack.c.l.b16 %v721
  %v897 = vunpack.c.h.b16 %v721
  %v898 = vunpack.c.l.b16 %v722
  %v899 = vunpack.c.h.b16 %v722
  %v900 = vunpack.c.l.b16 %v723
  %v901 = vunpack.c.h.b16 %v723
  %v902 = vunpack.c.l.b16 %v724
  %v903 = vunpack.c.h.b16 %v724
  %v904 = vunpack.c.l.b16 %v725
  %v905 = vunpack.c.h.b16 %v725
  %v906 = vunpack.c.l.b16 %v726
  %v907 = vunpack.c.h.b16 %v726
  %v908 = vunpack.c.l.b16 %v727
  %v909 = vunpack.c.h.b16 %v727
  %v910 = vunpack.c.l.b16 %v728
  %v911 = vunpack.c.h.b16 %v728
  %v912 = vunpack.c.l.b16 %v729
  %v913 = vunpack.c.h.b16 %v729
  %v914 = vunpack.c.l.b16 %v730
  %v915 = vunpack.c.h.b16 %v730
  %v916 = vunpack.c.l.b16 %v731
  %v917 = vunpack.c.h.b16 %v731
  %v918 = vunpack.c.l.b16 %v732
  %v919 = vunpack.c.h.b16 %v732
  %v920 = vunpack.c.l.b16 %v733
  %v921 = vunpack.c.h.b16 %v733
  %v922 = vunpack.c.l.b16 %v734
  %v923 = vunpack.c.h.b16 %v734
  %v924 = vunpack.c.l.b16 %v735
  %v925 = vunpack.c.h.b16 %v735
  %v926 = vunpack.c.l.b16 %v736
  %v927 = vunpack.c.h.b16 %v736
  %v928 = vunpack.c.l.b16 %v737
  %v929 = vunpack.c.h.b16 %v737
  %v930 = vunpack.c.l.b16 %v738
  %v931 = vunpack.c.h.b16 %v738
  %v932 = vpack.c.b16 %v806, %v804
  %v933 = vpack.c.b16 %v807, %v805
  %v934 = vpack.c.b16 %v810, %v808
  %v935 = vpack.c.b16 %v811, %v809
  %v936 = vpack.c.b16 %v814, %v812
  %v937 = vpack.c.b16 %v815, %v813
  %v938 = vpack.c.b16 %v818, %v816
  %v939 = vpack.c.b16 %v819, %v817
  %v940 = vpack.c.b16 %v822, %v820
  %v941 = vpack.c.b16 %v823, %v821
  %v942 = vpack.c.b16 %v826, %v824
  %v943 = vpack.c.b16 %v827, %v825
  %v944 = vpack.c.b16 %v830, %v828
  %v945 = vpack.c.b16 %v831, %v829
  %v946 = vpack.c.b16 %v834, %v832
  %v947 = vpack.c.b16 %v835, %v833
  %v948 = vpack.c.b16 %v838, %v836
  %v949 = vpack.c.b16 %v839, %v837
  %v950 = vpack.c.b16 %v842, %v840
  %v951 = vpack.c.b16 %v843, %v841
  %v952 = vpack.c.b16 %v846, %v844
  %v953 = vpack.c.b16 %v847, %v845
  %v954 = vpack.c.b16 %v850, %v848
  %v955 = vpack.c.b16 %v851, %v849
  %v956 = vpack.c.b16 %v854, %v852
  %v957 = vpack.c.b16 %v855, %v853
  %v958 = vpack.c.b16 %v858, %v856
  %v959 = vpack.c.b16 %v859, %v857
  %v960 = vpack.c.b16 %v862, %v860
  %v961 = vpack.c.b16 %v863, %v861
  %v962 = vpack.c.b16 %v866, %v864
  %v963 = vpack.c.b16 %v867, %v865
  %v964 = vpack.c.b16 %v870, %v868
  %v965 = vpack.c.b16 %v871, %v869
  %v966 = vpack.c.b16 %v874, %v872
  %v967 = vpack.c.b16 %v875, %v873
  %v968 = vpack.c.b16 %v878, %v876
  %v969 = vpack.c.b16 %v879, %v877
  %v970 = vpack.c.b16 %v882, %v880
  %v971 = vpack.c.b16 %v883, %v881
  %v972 = vpack.c.b16 %v886, %v884
  %v973 = vpack.c.b16 %v887, %v885
  %v974 = vpack.c.b16 %v890, %v888
  %v975 = vpack.c.b16 %v891, %v889
  %v976 = vpack.c.b16 %v894, %v892
  %v977 = vpack.c.b16 %v895, %v893
  %v978 = vpack.c.b16 %v898, %v896
  %v979 = vpack.c.b16 %v899, %v897
  %v980 = vpack.c.b16 %v902, %v900
  %v981 = vpack.c.b16 %v903, %v901
  %v982 = vpack.c.b16 %v906, %v904
  %v983 = vpack.c.b16 %v907, %v905
  %v984 = vpack.c.b16 %v910, %v908
  %v985 = vpack.c.b16 %v911, %v909
  %v986 = vpack.c.b16 %v914, %v912
  %v987 = vpack.c.b16 %v915, %v913
  %v988 = vpack.c.b16 %v918, %v916
  %v989 = vpack.c.b16 %v919, %v917
  %v990 = vpack.c.b16 %v922, %v920
  %v991 = vpack.c.b16 %v923, %v921
  %v992 = vpack.c.b16 %v926, %v924
  %v993 = vpack.c.b16 %v927, %v925
  %v994 = vpack.c.b16 %v930, %v928
  %v995 = vpack.c.b16 %v931, %v929
  %1060 = vmatprep.subr.bf16.mxu0 %v933
  %1061 = vmatpush1.bf16.msra.mxu0 %v932
  %1062 = vmatprep.subr.bf16.mxu0 %v935
  %1063 = vmatpush1.bf16.msra.mxu0 %v934
  %1064 = vmatprep.subr.bf16.mxu0 %v937
  %1065 = vmatpush1.bf16.msra.mxu0 %v936
  %1066 = vmatprep.subr.bf16.mxu0 %v939
  %1067 = vmatpush1.bf16.msra.mxu0 %v938
  %1068 = vmatprep.subr.bf16.mxu0 %v941
  %1069 = vmatpush1.bf16.msra.mxu0 %v940
  %1070 = vmatprep.subr.bf16.mxu0 %v943
  %1071 = vmatpush1.bf16.msra.mxu0 %v942
  %1072 = vmatprep.subr.bf16.mxu0 %v945
  %1073 = vmatpush1.bf16.msra.mxu0 %v944
  %1074 = vmatprep.subr.bf16.mxu0 %v947
  %1075 = vmatpush1.bf16.msra.mxu0 %v946
  %1076 = vmatprep.subr.bf16.mxu0 %v949
  %1077 = vmatpush1.bf16.msra.mxu0 %v948
  %1078 = vmatprep.subr.bf16.mxu0 %v951
  %1079 = vmatpush1.bf16.msra.mxu0 %v950
  %1080 = vmatprep.subr.bf16.mxu0 %v953
  %1081 = vmatpush1.bf16.msra.mxu0 %v952
  %1082 = vmatprep.subr.bf16.mxu0 %v955
  %1083 = vmatpush1.bf16.msra.mxu0 %v954
  %1084 = vmatprep.subr.bf16.mxu0 %v957
  %1085 = vmatpush1.bf16.msra.mxu0 %v956
  %1086 = vmatprep.subr.bf16.mxu0 %v959
  %1087 = vmatpush1.bf16.msra.mxu0 %v958
  %1088 = vmatprep.subr.bf16.mxu0 %v961
  %1089 = vmatpush1.bf16.msra.mxu0 %v960
  %1090 = vmatprep.subr.bf16.mxu0 %v963
  %1091 = vmatpush1.bf16.msra.mxu0 %v962
  %1092 = vmatprep.mubr.bf16.mxu0 %v299
  %1093 = vmatmul.mubr.bf16.gmra.mrb[0].mxu0 0
  %v1094 = vpop.f32.mrb[0].mxu0
  %v1095 = vadd.f32 0.0, %v1094
  %v1096 = vpop.f32.mrb[0].mxu0
  %v1097 = vadd.f32 0.0, %v1096
  %v1098 = vpop.f32.mrb[0].mxu0
  %v1099 = vpop.f32.mrb[0].mxu0
  %1100 = vdwg.mxu0
  %1101 = vmatprep.subr.bf16.mxu0 %v965
  %1102 = vmatpush1.bf16.msra.mxu0 %v964
  %1103 = vmatprep.subr.bf16.mxu0 %v967
  %1104 = vmatpush1.bf16.msra.mxu0 %v966
  %1105 = vmatprep.subr.bf16.mxu0 %v969
  %1106 = vmatpush1.bf16.msra.mxu0 %v968
  %1107 = vmatprep.subr.bf16.mxu0 %v971
  %1108 = vmatpush1.bf16.msra.mxu0 %v970
  %1109 = vmatprep.subr.bf16.mxu0 %v973
  %1110 = vmatpush1.bf16.msra.mxu0 %v972
  %1111 = vmatprep.subr.bf16.mxu0 %v975
  %1112 = vmatpush1.bf16.msra.mxu0 %v974
  %1113 = vmatprep.subr.bf16.mxu0 %v977
  %1114 = vmatpush1.bf16.msra.mxu0 %v976
  %1115 = vmatprep.subr.bf16.mxu0 %v979
  %1116 = vmatpush1.bf16.msra.mxu0 %v978
  %1117 = vmatprep.subr.bf16.mxu0 %v981
  %1118 = vmatpush1.bf16.msra.mxu0 %v980
  %1119 = vmatprep.subr.bf16.mxu0 %v983
  %1120 = vmatpush1.bf16.msra.mxu0 %v982
  %1121 = vmatprep.subr.bf16.mxu0 %v985
  %1122 = vmatpush1.bf16.msra.mxu0 %v984
  %1123 = vmatprep.subr.bf16.mxu0 %v987
  %1124 = vmatpush1.bf16.msra.mxu0 %v986
  %1125 = vmatprep.subr.bf16.mxu0 %v989
  %1126 = vmatpush1.bf16.msra.mxu0 %v988
  %1127 = vmatprep.subr.bf16.mxu0 %v991
  %1128 = vmatpush1.bf16.msra.mxu0 %v990
  %1129 = vmatprep.subr.bf16.mxu0 %v993
  %1130 = vmatpush1.bf16.msra.mxu0 %v992
  %1131 = vmatprep.subr.bf16.mxu0 %v995
  %1132 = vmatpush1.bf16.msra.mxu0 %v994
  %1133 = vmatprep.mubr.bf16.mxu0 %v406
  %1134 = vmatmul.mubr.bf16.gmra.mrb[0].mxu0 %v353
  %v1135 = vpop.f32.mrb[0].mxu0
  %v1136 = vadd.f32 %v1095, %v1135
  %v1137 = vpop.f32.mrb[0].mxu0
  %v1138 = vadd.f32 %v1097, %v1137
  %v1139 = vpop.f32.mrb[0].mxu0
  %v1140 = vpop.f32.mrb[0].mxu0
  %1141 = vdwg.mxu0
  %v1142 = vmax.f32 %v1136, %v1138
  %v1144 = vlaneseq
  %v1145 = vshrl.u32 %v1144, 7
  %v1146 = vsub.s32 0, %v1145
  %v1147 = vrot.slane %v739, %v1146
  %v1149 = vadd.f32 %v1142, %v1147
  %v1150 = vmax.f32 %v1149, 0.0
  %1152 = vrot.lane.b32.xlu0 %v1150, 112
  %v1153 = vpop.permute.xlu0 %1152
  %v1155 = vmax.f32 %v1150, %v1153
  %v1156 = vpack.c.bf16 %v1155, %v1155
  %1157 = vmatprep.subr.bf16.mxu0 %v933
  %1158 = vmatpush1.bf16.msra.mxu0 %v932
  %1159 = vmatprep.subr.bf16.mxu0 %v935
  %1160 = vmatpush1.bf16.msra.mxu0 %v934
  %1161 = vmatprep.subr.bf16.mxu0 %v937
  %1162 = vmatpush1.bf16.msra.mxu0 %v936
  %1163 = vmatprep.subr.bf16.mxu0 %v939
  %1164 = vmatpush1.bf16.msra.mxu0 %v938
  %1165 = vmatprep.subr.bf16.mxu0 %v941
  %1166 = vmatpush1.bf16.msra.mxu0 %v940
  %1167 = vmatprep.subr.bf16.mxu0 %v943
  %1168 = vmatpush1.bf16.msra.mxu0 %v942
  %1169 = vmatprep.subr.bf16.mxu0 %v945
  %1170 = vmatpush1.bf16.msra.mxu0 %v944
  %1171 = vmatprep.subr.bf16.mxu0 %v947
  %1172 = vmatpush1.bf16.msra.mxu0 %v946
  %1173 = vmatprep.subr.bf16.mxu0 %v949
  %1174 = vmatpush1.bf16.msra.mxu0 %v948
  %1175 = vmatprep.subr.bf16.mxu0 %v951
  %1176 = vmatpush1.bf16.msra.mxu0 %v950
  %1177 = vmatprep.subr.bf16.mxu0 %v953
  %1178 = vmatpush1.bf16.msra.mxu0 %v952
  %1179 = vmatprep.subr.bf16.mxu0 %v955
  %1180 = vmatpush1.bf16.msra.mxu0 %v954
  %1181 = vmatprep.subr.bf16.mxu0 %v957
  %1182 = vmatpush1.bf16.msra.mxu0 %v956
  %1183 = vmatprep.subr.bf16.mxu0 %v959
  %1184 = vmatpush1.bf16.msra.mxu0 %v958
  %1185 = vmatprep.subr.bf16.mxu0 %v961
  %1186 = vmatpush1.bf16.msra.mxu0 %v960
  %1187 = vmatprep.subr.bf16.mxu0 %v963
  %1188 = vmatpush1.bf16.msra.mxu0 %v962
  %1189 = vmatprep.mubr.bf16.mxu0 %v406
  %1190 = vmatmul.mubr.bf16.gmra.mrb[0].mxu0 %v353
  %v1191 = vpop.f32.mrb[0].mxu0
  %v1192 = vadd.f32 0.0, %v1191
  %v1193 = vpop.f32.mrb[0].mxu0
  %v1194 = vadd.f32 0.0, %v1193
  %v1195 = vpop.f32.mrb[0].mxu0
  %v1196 = vpop.f32.mrb[0].mxu0
  %1197 = vdwg.mxu0
  %1198 = vmatprep.subr.bf16.mxu0 %v965
  %1199 = vmatpush1.bf16.msra.mxu0 %v964
  %1200 = vmatprep.subr.bf16.mxu0 %v967
  %1201 = vmatpush1.bf16.msra.mxu0 %v966
  %1202 = vmatprep.subr.bf16.mxu0 %v969
  %1203 = vmatpush1.bf16.msra.mxu0 %v968
  %1204 = vmatprep.subr.bf16.mxu0 %v971
  %1205 = vmatpush1.bf16.msra.mxu0 %v970
  %1206 = vmatprep.subr.bf16.mxu0 %v973
  %1207 = vmatpush1.bf16.msra.mxu0 %v972
  %1208 = vmatprep.subr.bf16.mxu0 %v975
  %1209 = vmatpush1.bf16.msra.mxu0 %v974
  %1210 = vmatprep.subr.bf16.mxu0 %v977
  %1211 = vmatpush1.bf16.msra.mxu0 %v976
  %1212 = vmatprep.subr.bf16.mxu0 %v979
  %1213 = vmatpush1.bf16.msra.mxu0 %v978
  %1214 = vmatprep.subr.bf16.mxu0 %v981
  %1215 = vmatpush1.bf16.msra.mxu0 %v980
  %1216 = vmatprep.subr.bf16.mxu0 %v983
  %1217 = vmatpush1.bf16.msra.mxu0 %v982
  %1218 = vmatprep.subr.bf16.mxu0 %v985
  %1219 = vmatpush1.bf16.msra.mxu0 %v984
  %1220 = vmatprep.subr.bf16.mxu0 %v987
  %1221 = vmatpush1.bf16.msra.mxu0 %v986
  %1222 = vmatprep.subr.bf16.mxu0 %v989
  %1223 = vmatpush1.bf16.msra.mxu0 %v988
  %1224 = vmatprep.subr.bf16.mxu0 %v991
  %1225 = vmatpush1.bf16.msra.mxu0 %v990
  %1226 = vmatprep.subr.bf16.mxu0 %v993
  %1227 = vmatpush1.bf16.msra.mxu0 %v992
  %1228 = vmatprep.subr.bf16.mxu0 %v995
  %1229 = vmatpush1.bf16.msra.mxu0 %v994
  %1230 = vmatprep.mubr.bf16.mxu0 %v513
  %1231 = vmatmul.mubr.bf16.gmra.mrb[0].mxu0 %v460
  %v1232 = vpop.f32.mrb[0].mxu0
  %v1233 = vadd.f32 %v1192, %v1232
  %v1234 = vpop.f32.mrb[0].mxu0
  %v1235 = vadd.f32 %v1194, %v1234
  %v1236 = vpop.f32.mrb[0].mxu0
  %v1237 = vpop.f32.mrb[0].mxu0
  %1238 = vdwg.mxu0
  %v1239 = vmax.f32 %v1233, %v1235
  %v1240 = vadd.f32 %v1239, %v1147
  %v1241 = vmax.f32 %v1240, 0.0
  %1243 = vrot.lane.b32.xlu0 %v1241, 112
  %v1244 = vpop.permute.xlu0 %1243
  %v1246 = vmax.f32 %v1241, %v1244
  %v1247 = vpack.c.bf16 %v1246, %v1246
  %1248 = vmatprep.subr.bf16.mxu0 %v933
  %1249 = vmatpush1.bf16.msra.mxu0 %v932
  %1250 = vmatprep.subr.bf16.mxu0 %v935
  %1251 = vmatpush1.bf16.msra.mxu0 %v934
  %1252 = vmatprep.subr.bf16.mxu0 %v937
  %1253 = vmatpush1.bf16.msra.mxu0 %v936
  %1254 = vmatprep.subr.bf16.mxu0 %v939
  %1255 = vmatpush1.bf16.msra.mxu0 %v938
  %1256 = vmatprep.subr.bf16.mxu0 %v941
  %1257 = vmatpush1.bf16.msra.mxu0 %v940
  %1258 = vmatprep.subr.bf16.mxu0 %v943
  %1259 = vmatpush1.bf16.msra.mxu0 %v942
  %1260 = vmatprep.subr.bf16.mxu0 %v945
  %1261 = vmatpush1.bf16.msra.mxu0 %v944
  %1262 = vmatprep.subr.bf16.mxu0 %v947
  %1263 = vmatpush1.bf16.msra.mxu0 %v946
  %1264 = vmatprep.subr.bf16.mxu0 %v949
  %1265 = vmatpush1.bf16.msra.mxu0 %v948
  %1266 = vmatprep.subr.bf16.mxu0 %v951
  %1267 = vmatpush1.bf16.msra.mxu0 %v950
  %1268 = vmatprep.subr.bf16.mxu0 %v953
  %1269 = vmatpush1.bf16.msra.mxu0 %v952
  %1270 = vmatprep.subr.bf16.mxu0 %v955
  %1271 = vmatpush1.bf16.msra.mxu0 %v954
  %1272 = vmatprep.subr.bf16.mxu0 %v957
  %1273 = vmatpush1.bf16.msra.mxu0 %v956
  %1274 = vmatprep.subr.bf16.mxu0 %v959
  %1275 = vmatpush1.bf16.msra.mxu0 %v958
  %1276 = vmatprep.subr.bf16.mxu0 %v961
  %1277 = vmatpush1.bf16.msra.mxu0 %v960
  %1278 = vmatprep.subr.bf16.mxu0 %v963
  %1279 = vmatpush1.bf16.msra.mxu0 %v962
  %1280 = vmatprep.mubr.bf16.mxu0 %v513
  %1281 = vmatmul.mubr.bf16.gmra.mrb[0].mxu0 %v460
  %v1282 = vpop.f32.mrb[0].mxu0
  %v1283 = vadd.f32 0.0, %v1282
  %v1284 = vpop.f32.mrb[0].mxu0
  %v1285 = vadd.f32 0.0, %v1284
  %v1286 = vpop.f32.mrb[0].mxu0
  %v1287 = vpop.f32.mrb[0].mxu0
  %1288 = vdwg.mxu0
  %1289 = vmatprep.subr.bf16.mxu0 %v965
  %1290 = vmatpush1.bf16.msra.mxu0 %v964
  %1291 = vmatprep.subr.bf16.mxu0 %v967
  %1292 = vmatpush1.bf16.msra.mxu0 %v966
  %1293 = vmatprep.subr.bf16.mxu0 %v969
  %1294 = vmatpush1.bf16.msra.mxu0 %v968
  %1295 = vmatprep.subr.bf16.mxu0 %v971
  %1296 = vmatpush1.bf16.msra.mxu0 %v970
  %1297 = vmatprep.subr.bf16.mxu0 %v973
  %1298 = vmatpush1.bf16.msra.mxu0 %v972
  %1299 = vmatprep.subr.bf16.mxu0 %v975
  %1300 = vmatpush1.bf16.msra.mxu0 %v974
  %1301 = vmatprep.subr.bf16.mxu0 %v977
  %1302 = vmatpush1.bf16.msra.mxu0 %v976
  %1303 = vmatprep.subr.bf16.mxu0 %v979
  %1304 = vmatpush1.bf16.msra.mxu0 %v978
  %1305 = vmatprep.subr.bf16.mxu0 %v981
  %1306 = vmatpush1.bf16.msra.mxu0 %v980
  %1307 = vmatprep.subr.bf16.mxu0 %v983
  %1308 = vmatpush1.bf16.msra.mxu0 %v982
  %1309 = vmatprep.subr.bf16.mxu0 %v985
  %1310 = vmatpush1.bf16.msra.mxu0 %v984
  %1311 = vmatprep.subr.bf16.mxu0 %v987
  %1312 = vmatpush1.bf16.msra.mxu0 %v986
  %1313 = vmatprep.subr.bf16.mxu0 %v989
  %1314 = vmatpush1.bf16.msra.mxu0 %v988
  %1315 = vmatprep.subr.bf16.mxu0 %v991
  %1316 = vmatpush1.bf16.msra.mxu0 %v990
  %1317 = vmatprep.subr.bf16.mxu0 %v993
  %1318 = vmatpush1.bf16.msra.mxu0 %v992
  %1319 = vmatprep.subr.bf16.mxu0 %v995
  %1320 = vmatpush1.bf16.msra.mxu0 %v994
  %1321 = vmatprep.mubr.bf16.mxu0 %v620
  %1322 = vmatmul.mubr.bf16.gmra.mrb[0].mxu0 %v567
  %v1323 = vpop.f32.mrb[0].mxu0
  %v1324 = vadd.f32 %v1283, %v1323
  %v1325 = vpop.f32.mrb[0].mxu0
  %v1326 = vadd.f32 %v1285, %v1325
  %v1327 = vpop.f32.mrb[0].mxu0
  %v1328 = vpop.f32.mrb[0].mxu0
  %1329 = vdwg.mxu0
  %v1330 = vmax.f32 %v1324, %v1326
  %v1331 = vadd.f32 %v1330, %v1147
  %v1332 = vmax.f32 %v1331, 0.0
  %1334 = vrot.lane.b32.xlu0 %v1332, 112
  %v1335 = vpop.permute.xlu0 %1334
  %v1337 = vmax.f32 %v1332, %v1335
  %v1338 = vpack.c.bf16 %v1337, %v1337
  %1339 = vmatprep.subr.bf16.mxu0 %v933
  %1340 = vmatpush1.bf16.msra.mxu0 %v932
  %1341 = vmatprep.subr.bf16.mxu0 %v935
  %1342 = vmatpush1.bf16.msra.mxu0 %v934
  %1343 = vmatprep.subr.bf16.mxu0 %v937
  %1344 = vmatpush1.bf16.msra.mxu0 %v936
  %1345 = vmatprep.subr.bf16.mxu0 %v939
  %1346 = vmatpush1.bf16.msra.mxu0 %v938
  %1347 = vmatprep.subr.bf16.mxu0 %v941
  %1348 = vmatpush1.bf16.msra.mxu0 %v940
  %1349 = vmatprep.subr.bf16.mxu0 %v943
  %1350 = vmatpush1.bf16.msra.mxu0 %v942
  %1351 = vmatprep.subr.bf16.mxu0 %v945
  %1352 = vmatpush1.bf16.msra.mxu0 %v944
  %1353 = vmatprep.subr.bf16.mxu0 %v947
  %1354 = vmatpush1.bf16.msra.mxu0 %v946
  %1355 = vmatprep.subr.bf16.mxu0 %v949
  %1356 = vmatpush1.bf16.msra.mxu0 %v948
  %1357 = vmatprep.subr.bf16.mxu0 %v951
  %1358 = vmatpush1.bf16.msra.mxu0 %v950
  %1359 = vmatprep.subr.bf16.mxu0 %v953
  %1360 = vmatpush1.bf16.msra.mxu0 %v952
  %1361 = vmatprep.subr.bf16.mxu0 %v955
  %1362 = vmatpush1.bf16.msra.mxu0 %v954
  %1363 = vmatprep.subr.bf16.mxu0 %v957
  %1364 = vmatpush1.bf16.msra.mxu0 %v956
  %1365 = vmatprep.subr.bf16.mxu0 %v959
  %1366 = vmatpush1.bf16.msra.mxu0 %v958
  %1367 = vmatprep.subr.bf16.mxu0 %v961
  %1368 = vmatpush1.bf16.msra.mxu0 %v960
  %1369 = vmatprep.subr.bf16.mxu0 %v963
  %1370 = vmatpush1.bf16.msra.mxu0 %v962
  %1371 = vmatprep.mubr.bf16.mxu0 %v620
  %1372 = vmatmul.mubr.bf16.gmra.mrb[0].mxu0 %v567
  %v1373 = vpop.f32.mrb[0].mxu0
  %v1374 = vadd.f32 0.0, %v1373
  %v1375 = vpop.f32.mrb[0].mxu0
  %v1376 = vadd.f32 0.0, %v1375
  %v1377 = vpop.f32.mrb[0].mxu0
  %v1378 = vpop.f32.mrb[0].mxu0
  %1379 = vdwg.mxu0
  %1380 = vmatprep.subr.bf16.mxu0 %v965
  %1381 = vmatpush1.bf16.msra.mxu0 %v964
  %1382 = vmatprep.subr.bf16.mxu0 %v967
  %1383 = vmatpush1.bf16.msra.mxu0 %v966
  %1384 = vmatprep.subr.bf16.mxu0 %v969
  %1385 = vmatpush1.bf16.msra.mxu0 %v968
  %1386 = vmatprep.subr.bf16.mxu0 %v971
  %1387 = vmatpush1.bf16.msra.mxu0 %v970
  %1388 = vmatprep.subr.bf16.mxu0 %v973
  %1389 = vmatpush1.bf16.msra.mxu0 %v972
  %1390 = vmatprep.subr.bf16.mxu0 %v975
  %1391 = vmatpush1.bf16.msra.mxu0 %v974
  %1392 = vmatprep.subr.bf16.mxu0 %v977
  %1393 = vmatpush1.bf16.msra.mxu0 %v976
  %1394 = vmatprep.subr.bf16.mxu0 %v979
  %1395 = vmatpush1.bf16.msra.mxu0 %v978
  %1396 = vmatprep.subr.bf16.mxu0 %v981
  %1397 = vmatpush1.bf16.msra.mxu0 %v980
  %1398 = vmatprep.subr.bf16.mxu0 %v983
  %1399 = vmatpush1.bf16.msra.mxu0 %v982
  %1400 = vmatprep.subr.bf16.mxu0 %v985
  %1401 = vmatpush1.bf16.msra.mxu0 %v984
  %1402 = vmatprep.subr.bf16.mxu0 %v987
  %1403 = vmatpush1.bf16.msra.mxu0 %v986
  %1404 = vmatprep.subr.bf16.mxu0 %v989
  %1405 = vmatpush1.bf16.msra.mxu0 %v988
  %1406 = vmatprep.subr.bf16.mxu0 %v991
  %1407 = vmatpush1.bf16.msra.mxu0 %v990
  %1408 = vmatprep.subr.bf16.mxu0 %v993
  %1409 = vmatpush1.bf16.msra.mxu0 %v992
  %1410 = vmatprep.subr.bf16.mxu0 %v995
  %1411 = vmatpush1.bf16.msra.mxu0 %v994
  %1412 = vmatprep.mubr.bf16.mxu0 0
  %1413 = vmatmul.mubr.bf16.gmra.mrb[0].mxu0 %v674
  %v1414 = vpop.f32.mrb[0].mxu0
  %v1415 = vadd.f32 %v1374, %v1414
  %v1416 = vpop.f32.mrb[0].mxu0
  %v1417 = vadd.f32 %v1376, %v1416
  %v1418 = vpop.f32.mrb[0].mxu0
  %v1419 = vpop.f32.mrb[0].mxu0
  %1420 = vdwg.mxu0
  %v1421 = vmax.f32 %v1415, %v1417
  %v1422 = vadd.f32 %v1421, %v1147
  %v1423 = vmax.f32 %v1422, 0.0
  %1425 = vrot.lane.b32.xlu0 %v1423, 112
  %v1426 = vpop.permute.xlu0 %1425
  %v1428 = vmax.f32 %v1423, %v1426
  %v1429 = vpack.c.bf16 %v1428, %v1428
  %v1430 = vld [vmem:[%s5] sm:$0xff]
  %v1431 = vld [vmem:[%s5 + $0x8] sm:$0xff]
  %v1432 = vld [vmem:[%s5 + $0x10] sm:$0xff]
  %v1433 = vld [vmem:[%s5 + $0x18] sm:$0xff]
  %v1434 = vld [vmem:[%s5 + $0x20] sm:$0xff]
  %v1435 = vld [vmem:[%s5 + $0x28] sm:$0xff]
  %v1436 = vld [vmem:[%s5 + $0x30] sm:$0xff]
  %v1437 = vld [vmem:[%s5 + $0x38] sm:$0xff]
  %v1438 = vld [vmem:[%s5 + $0x40] sm:$0xff]
  %v1439 = vld [vmem:[%s5 + $0x48] sm:$0xff]
  %v1440 = vld [vmem:[%s5 + $0x50] sm:$0xff]
  %v1441 = vld [vmem:[%s5 + $0x58] sm:$0xff]
  %v1442 = vld [vmem:[%s5 + $0x60] sm:$0xff]
  %v1443 = vld [vmem:[%s5 + $0x68] sm:$0xff]
  %v1444 = vld [vmem:[%s5 + $0x70] sm:$0xff]
  %v1445 = vld [vmem:[%s5 + $0x78] sm:$0xff]
  %v1446 = vld [vmem:[%s5 + $0x80] sm:$0xff]
  %v1447 = vld [vmem:[%s5 + $0x88] sm:$0xff]
  %v1448 = vld [vmem:[%s5 + $0x90] sm:$0xff]
  %v1449 = vld [vmem:[%s5 + $0x98] sm:$0xff]
  %v1450 = vld [vmem:[%s5 + $0xa0] sm:$0xff]
  %v1451 = vld [vmem:[%s5 + $0xa8] sm:$0xff]
  %v1452 = vld [vmem:[%s5 + $0xb0] sm:$0xff]
  %v1453 = vld [vmem:[%s5 + $0xb8] sm:$0xff]
  %v1454 = vld [vmem:[%s5 + $0xc0] sm:$0xff]
  %v1455 = vld [vmem:[%s5 + $0xc8] sm:$0xff]
  %v1456 = vld [vmem:[%s5 + $0xd0] sm:$0xff]
  %v1457 = vld [vmem:[%s5 + $0xd8] sm:$0xff]
  %v1458 = vld [vmem:[%s5 + $0xe0] sm:$0xff]
  %v1459 = vld [vmem:[%s5 + $0xe8] sm:$0xff]
  %v1460 = vld [vmem:[%s5 + $0xf0] sm:$0xff]
  %v1461 = vld [vmem:[%s5 + $0xf8] sm:$0xff]
  %v1462 = vld [vmem:[%s5 + $0x100] sm:$0xff]
  %v1463 = vld [vmem:[%s5 + $0x108] sm:$0xff]
  %v1464 = vld [vmem:[%s5 + $0x110] sm:$0xff]
  %v1465 = vld [vmem:[%s5 + $0x118] sm:$0xff]
  %v1466 = vld [vmem:[%s5 + $0x120] sm:$0xff]
  %v1467 = vld [vmem:[%s5 + $0x128] sm:$0xff]
  %v1468 = vld [vmem:[%s5 + $0x130] sm:$0xff]
  %v1469 = vld [vmem:[%s5 + $0x138] sm:$0xff]
  %v1470 = vld [vmem:[%s5 + $0x140] sm:$0xff]
  %v1471 = vld [vmem:[%s5 + $0x148] sm:$0xff]
  %v1472 = vld [vmem:[%s5 + $0x150] sm:$0xff]
  %v1473 = vld [vmem:[%s5 + $0x158] sm:$0xff]
  %v1474 = vld [vmem:[%s5 + $0x160] sm:$0xff]
  %v1475 = vld [vmem:[%s5 + $0x168] sm:$0xff]
  %v1476 = vld [vmem:[%s5 + $0x170] sm:$0xff]
  %v1477 = vld [vmem:[%s5 + $0x178] sm:$0xff]
  %v1478 = vld [vmem:[%s5 + $0x180] sm:$0xff]
  %v1479 = vld [vmem:[%s5 + $0x188] sm:$0xff]
  %v1480 = vld [vmem:[%s5 + $0x190] sm:$0xff]
  %v1481 = vld [vmem:[%s5 + $0x198] sm:$0xff]
  %v1482 = vld [vmem:[%s5 + $0x1a0] sm:$0xff]
  %v1483 = vld [vmem:[%s5 + $0x1a8] sm:$0xff]
  %v1484 = vld [vmem:[%s5 + $0x1b0] sm:$0xff]
  %v1485 = vld [vmem:[%s5 + $0x1b8] sm:$0xff]
  %v1486 = vld [vmem:[%s5 + $0x1c0] sm:$0xff]
  %v1487 = vld [vmem:[%s5 + $0x1c8] sm:$0xff]
  %v1488 = vld [vmem:[%s5 + $0x1d0] sm:$0xff]
  %v1489 = vld [vmem:[%s5 + $0x1d8] sm:$0xff]
  %v1490 = vld [vmem:[%s5 + $0x1e0] sm:$0xff]
  %v1491 = vld [vmem:[%s5 + $0x1e8] sm:$0xff]
  %v1492 = vld [vmem:[%s5 + $0x1f0] sm:$0xff]
  %v1493 = vld [vmem:[%s5 + $0x1f8] sm:$0xff]
  %v1494 = vld [vmem:[%s6] sm:$0x1]
  %v1559 = vunpack.c.l.b16 %v1430
  %v1560 = vunpack.c.h.b16 %v1430
  %v1561 = vunpack.c.l.b16 %v1431
  %v1562 = vunpack.c.h.b16 %v1431
  %v1563 = vunpack.c.l.b16 %v1432
  %v1564 = vunpack.c.h.b16 %v1432
  %v1565 = vunpack.c.l.b16 %v1433
  %v1566 = vunpack.c.h.b16 %v1433
  %v1567 = vunpack.c.l.b16 %v1434
  %v1568 = vunpack.c.h.b16 %v1434
  %v1569 = vunpack.c.l.b16 %v1435
  %v1570 = vunpack.c.h.b16 %v1435
  %v1571 = vunpack.c.l.b16 %v1436
  %v1572 = vunpack.c.h.b16 %v1436
  %v1573 = vunpack.c.l.b16 %v1437
  %v1574 = vunpack.c.h.b16 %v1437
  %v1575 = vunpack.c.l.b16 %v1438
  %v1576 = vunpack.c.h.b16 %v1438
  %v1577 = vunpack.c.l.b16 %v1439
  %v1578 = vunpack.c.h.b16 %v1439
  %v1579 = vunpack.c.l.b16 %v1440
  %v1580 = vunpack.c.h.b16 %v1440
  %v1581 = vunpack.c.l.b16 %v1441
  %v1582 = vunpack.c.h.b16 %v1441
  %v1583 = vunpack.c.l.b16 %v1442
  %v1584 = vunpack.c.h.b16 %v1442
  %v1585 = vunpack.c.l.b16 %v1443
  %v1586 = vunpack.c.h.b16 %v1443
  %v1587 = vunpack.c.l.b16 %v1444
  %v1588 = vunpack.c.h.b16 %v1444
  %v1589 = vunpack.c.l.b16 %v1445
  %v1590 = vunpack.c.h.b16 %v1445
  %v1591 = vunpack.c.l.b16 %v1446
  %v1592 = vunpack.c.h.b16 %v1446
  %v1593 = vunpack.c.l.b16 %v1447
  %v1594 = vunpack.c.h.b16 %v1447
  %v1595 = vunpack.c.l.b16 %v1448
  %v1596 = vunpack.c.h.b16 %v1448
  %v1597 = vunpack.c.l.b16 %v1449
  %v1598 = vunpack.c.h.b16 %v1449
  %v1599 = vunpack.c.l.b16 %v1450
  %v1600 = vunpack.c.h.b16 %v1450
  %v1601 = vunpack.c.l.b16 %v1451
  %v1602 = vunpack.c.h.b16 %v1451
  %v1603 = vunpack.c.l.b16 %v1452
  %v1604 = vunpack.c.h.b16 %v1452
  %v1605 = vunpack.c.l.b16 %v1453
  %v1606 = vunpack.c.h.b16 %v1453
  %v1607 = vunpack.c.l.b16 %v1454
  %v1608 = vunpack.c.h.b16 %v1454
  %v1609 = vunpack.c.l.b16 %v1455
  %v1610 = vunpack.c.h.b16 %v1455
  %v1611 = vunpack.c.l.b16 %v1456
  %v1612 = vunpack.c.h.b16 %v1456
  %v1613 = vunpack.c.l.b16 %v1457
  %v1614 = vunpack.c.h.b16 %v1457
  %v1615 = vunpack.c.l.b16 %v1458
  %v1616 = vunpack.c.h.b16 %v1458
  %v1617 = vunpack.c.l.b16 %v1459
  %v1618 = vunpack.c.h.b16 %v1459
  %v1619 = vunpack.c.l.b16 %v1460
  %v1620 = vunpack.c.h.b16 %v1460
  %v1621 = vunpack.c.l.b16 %v1461
  %v1622 = vunpack.c.h.b16 %v1461
  %v1623 = vunpack.c.l.b16 %v1462
  %v1624 = vunpack.c.h.b16 %v1462
  %v1625 = vunpack.c.l.b16 %v1463
  %v1626 = vunpack.c.h.b16 %v1463
  %v1627 = vunpack.c.l.b16 %v1464
  %v1628 = vunpack.c.h.b16 %v1464
  %v1629 = vunpack.c.l.b16 %v1465
  %v1630 = vunpack.c.h.b16 %v1465
  %v1631 = vunpack.c.l.b16 %v1466
  %v1632 = vunpack.c.h.b16 %v1466
  %v1633 = vunpack.c.l.b16 %v1467
  %v1634 = vunpack.c.h.b16 %v1467
  %v1635 = vunpack.c.l.b16 %v1468
  %v1636 = vunpack.c.h.b16 %v1468
  %v1637 = vunpack.c.l.b16 %v1469
  %v1638 = vunpack.c.h.b16 %v1469
  %v1639 = vunpack.c.l.b16 %v1470
  %v1640 = vunpack.c.h.b16 %v1470
  %v1641 = vunpack.c.l.b16 %v1471
  %v1642 = vunpack.c.h.b16 %v1471
  %v1643 = vunpack.c.l.b16 %v1472
  %v1644 = vunpack.c.h.b16 %v1472
  %v1645 = vunpack.c.l.b16 %v1473
  %v1646 = vunpack.c.h.b16 %v1473
  %v1647 = vunpack.c.l.b16 %v1474
  %v1648 = vunpack.c.h.b16 %v1474
  %v1649 = vunpack.c.l.b16 %v1475
  %v1650 = vunpack.c.h.b16 %v1475
  %v1651 = vunpack.c.l.b16 %v1476
  %v1652 = vunpack.c.h.b16 %v1476
  %v1653 = vunpack.c.l.b16 %v1477
  %v1654 = vunpack.c.h.b16 %v1477
  %v1655 = vunpack.c.l.b16 %v1478
  %v1656 = vunpack.c.h.b16 %v1478
  %v1657 = vunpack.c.l.b16 %v1479
  %v1658 = vunpack.c.h.b16 %v1479
  %v1659 = vunpack.c.l.b16 %v1480
  %v1660 = vunpack.c.h.b16 %v1480
  %v1661 = vunpack.c.l.b16 %v1481
  %v1662 = vunpack.c.h.b16 %v1481
  %v1663 = vunpack.c.l.b16 %v1482
  %v1664 = vunpack.c.h.b16 %v1482
  %v1665 = vunpack.c.l.b16 %v1483
  %v1666 = vunpack.c.h.b16 %v1483
  %v1667 = vunpack.c.l.b16 %v1484
  %v1668 = vunpack.c.h.b16 %v1484
  %v1669 = vunpack.c.l.b16 %v1485
  %v1670 = vunpack.c.h.b16 %v1485
  %v1671 = vunpack.c.l.b16 %v1486
  %v1672 = vunpack.c.h.b16 %v1486
  %v1673 = vunpack.c.l.b16 %v1487
  %v1674 = vunpack.c.h.b16 %v1487
  %v1675 = vunpack.c.l.b16 %v1488
  %v1676 = vunpack.c.h.b16 %v1488
  %v1677 = vunpack.c.l.b16 %v1489
  %v1678 = vunpack.c.h.b16 %v1489
  %v1679 = vunpack.c.l.b16 %v1490
  %v1680 = vunpack.c.h.b16 %v1490
  %v1681 = vunpack.c.l.b16 %v1491
  %v1682 = vunpack.c.h.b16 %v1491
  %v1683 = vunpack.c.l.b16 %v1492
  %v1684 = vunpack.c.h.b16 %v1492
  %v1685 = vunpack.c.l.b16 %v1493
  %v1686 = vunpack.c.h.b16 %v1493
  %v1687 = vpack.c.b16 %v1561, %v1559
  %v1688 = vpack.c.b16 %v1562, %v1560
  %v1689 = vpack.c.b16 %v1565, %v1563
  %v1690 = vpack.c.b16 %v1566, %v1564
  %v1691 = vpack.c.b16 %v1569, %v1567
  %v1692 = vpack.c.b16 %v1570, %v1568
  %v1693 = vpack.c.b16 %v1573, %v1571
  %v1694 = vpack.c.b16 %v1574, %v1572
  %v1695 = vpack.c.b16 %v1577, %v1575
  %v1696 = vpack.c.b16 %v1578, %v1576
  %v1697 = vpack.c.b16 %v1581, %v1579
  %v1698 = vpack.c.b16 %v1582, %v1580
  %v1699 = vpack.c.b16 %v1585, %v1583
  %v1700 = vpack.c.b16 %v1586, %v1584
  %v1701 = vpack.c.b16 %v1589, %v1587
  %v1702 = vpack.c.b16 %v1590, %v1588
  %v1703 = vpack.c.b16 %v1593, %v1591
  %v1704 = vpack.c.b16 %v1594, %v1592
  %v1705 = vpack.c.b16 %v1597, %v1595
  %v1706 = vpack.c.b16 %v1598, %v1596
  %v1707 = vpack.c.b16 %v1601, %v1599
  %v1708 = vpack.c.b16 %v1602, %v1600
  %v1709 = vpack.c.b16 %v1605, %v1603
  %v1710 = vpack.c.b16 %v1606, %v1604
  %v1711 = vpack.c.b16 %v1609, %v1607
  %v1712 = vpack.c.b16 %v1610, %v1608
  %v1713 = vpack.c.b16 %v1613, %v1611
  %v1714 = vpack.c.b16 %v1614, %v1612
  %v1715 = vpack.c.b16 %v1617, %v1615
  %v1716 = vpack.c.b16 %v1618, %v1616
  %v1717 = vpack.c.b16 %v1621, %v1619
  %v1718 = vpack.c.b16 %v1622, %v1620
  %v1719 = vpack.c.b16 %v1625, %v1623
  %v1720 = vpack.c.b16 %v1626, %v1624
  %v1721 = vpack.c.b16 %v1629, %v1627
  %v1722 = vpack.c.b16 %v1630, %v1628
  %v1723 = vpack.c.b16 %v1633, %v1631
  %v1724 = vpack.c.b16 %v1634, %v1632
  %v1725 = vpack.c.b16 %v1637, %v1635
  %v1726 = vpack.c.b16 %v1638, %v1636
  %v1727 = vpack.c.b16 %v1641, %v1639
  %v1728 = vpack.c.b16 %v1642, %v1640
  %v1729 = vpack.c.b16 %v1645, %v1643
  %v1730 = vpack.c.b16 %v1646, %v1644
  %v1731 = vpack.c.b16 %v1649, %v1647
  %v1732 = vpack.c.b16 %v1650, %v1648
  %v1733 = vpack.c.b16 %v1653, %v1651
  %v1734 = vpack.c.b16 %v1654, %v1652
  %v1735 = vpack.c.b16 %v1657, %v1655
  %v1736 = vpack.c.b16 %v1658, %v1656
  %v1737 = vpack.c.b16 %v1661, %v1659
  %v1738 = vpack.c.b16 %v1662, %v1660
  %v1739 = vpack.c.b16 %v1665, %v1663
  %v1740 = vpack.c.b16 %v1666, %v1664
  %v1741 = vpack.c.b16 %v1669, %v1667
  %v1742 = vpack.c.b16 %v1670, %v1668
  %v1743 = vpack.c.b16 %v1673, %v1671
  %v1744 = vpack.c.b16 %v1674, %v1672
  %v1745 = vpack.c.b16 %v1677, %v1675
  %v1746 = vpack.c.b16 %v1678, %v1676
  %v1747 = vpack.c.b16 %v1681, %v1679
  %v1748 = vpack.c.b16 %v1682, %v1680
  %v1749 = vpack.c.b16 %v1685, %v1683
  %v1750 = vpack.c.b16 %v1686, %v1684
  %1815 = vmatprep.subr.bf16.mxu0 %v1688
  %1816 = vmatpush1.bf16.msra.mxu0 %v1687
  %1817 = vmatprep.subr.bf16.mxu0 %v1690
  %1818 = vmatpush1.bf16.msra.mxu0 %v1689
  %1819 = vmatprep.subr.bf16.mxu0 %v1692
  %1820 = vmatpush1.bf16.msra.mxu0 %v1691
  %1821 = vmatprep.subr.bf16.mxu0 %v1694
  %1822 = vmatpush1.bf16.msra.mxu0 %v1693
  %1823 = vmatprep.subr.bf16.mxu0 %v1696
  %1824 = vmatpush1.bf16.msra.mxu0 %v1695
  %1825 = vmatprep.subr.bf16.mxu0 %v1698
  %1826 = vmatpush1.bf16.msra.mxu0 %v1697
  %1827 = vmatprep.subr.bf16.mxu0 %v1700
  %1828 = vmatpush1.bf16.msra.mxu0 %v1699
  %1829 = vmatprep.subr.bf16.mxu0 %v1702
  %1830 = vmatpush1.bf16.msra.mxu0 %v1701
  %1831 = vmatprep.subr.bf16.mxu0 %v1704
  %1832 = vmatpush1.bf16.msra.mxu0 %v1703
  %1833 = vmatprep.subr.bf16.mxu0 %v1706
  %1834 = vmatpush1.bf16.msra.mxu0 %v1705
  %1835 = vmatprep.subr.bf16.mxu0 %v1708
  %1836 = vmatpush1.bf16.msra.mxu0 %v1707
  %1837 = vmatprep.subr.bf16.mxu0 %v1710
  %1838 = vmatpush1.bf16.msra.mxu0 %v1709
  %1839 = vmatprep.subr.bf16.mxu0 %v1712
  %1840 = vmatpush1.bf16.msra.mxu0 %v1711
  %1841 = vmatprep.subr.bf16.mxu0 %v1714
  %1842 = vmatpush1.bf16.msra.mxu0 %v1713
  %1843 = vmatprep.subr.bf16.mxu0 %v1716
  %1844 = vmatpush1.bf16.msra.mxu0 %v1715
  %1845 = vmatprep.subr.bf16.mxu0 %v1718
  %1846 = vmatpush1.bf16.msra.mxu0 %v1717
  %1847 = vmatprep.mubr.bf16.mxu0 %v1156
  %1848 = vmatmul.mubr.bf16.gmra.mrb[0].mxu0 0
  %v1849 = vpop.f32.mrb[0].mxu0
  %v1850 = vadd.f32 0.0, %v1849
  %v1851 = vpop.f32.mrb[0].mxu0
  %v1852 = vadd.f32 0.0, %v1851
  %v1853 = vpop.f32.mrb[0].mxu0
  %v1854 = vpop.f32.mrb[0].mxu0
  %1855 = vdwg.mxu0
  %1856 = vmatprep.subr.bf16.mxu0 %v1720
  %1857 = vmatpush1.bf16.msra.mxu0 %v1719
  %1858 = vmatprep.subr.bf16.mxu0 %v1722
  %1859 = vmatpush1.bf16.msra.mxu0 %v1721
  %1860 = vmatprep.subr.bf16.mxu0 %v1724
  %1861 = vmatpush1.bf16.msra.mxu0 %v1723
  %1862 = vmatprep.subr.bf16.mxu0 %v1726
  %1863 = vmatpush1.bf16.msra.mxu0 %v1725
  %1864 = vmatprep.subr.bf16.mxu0 %v1728
  %1865 = vmatpush1.bf16.msra.mxu0 %v1727
  %1866 = vmatprep.subr.bf16.mxu0 %v1730
  %1867 = vmatpush1.bf16.msra.mxu0 %v1729
  %1868 = vmatprep.subr.bf16.mxu0 %v1732
  %1869 = vmatpush1.bf16.msra.mxu0 %v1731
  %1870 = vmatprep.subr.bf16.mxu0 %v1734
  %1871 = vmatpush1.bf16.msra.mxu0 %v1733
  %1872 = vmatprep.subr.bf16.mxu0 %v1736
  %1873 = vmatpush1.bf16.msra.mxu0 %v1735
  %1874 = vmatprep.subr.bf16.mxu0 %v1738
  %1875 = vmatpush1.bf16.msra.mxu0 %v1737
  %1876 = vmatprep.subr.bf16.mxu0 %v1740
  %1877 = vmatpush1.bf16.msra.mxu0 %v1739
  %1878 = vmatprep.subr.bf16.mxu0 %v1742
  %1879 = vmatpush1.bf16.msra.mxu0 %v1741
  %1880 = vmatprep.subr.bf16.mxu0 %v1744
  %1881 = vmatpush1.bf16.msra.mxu0 %v1743
  %1882 = vmatprep.subr.bf16.mxu0 %v1746
  %1883 = vmatpush1.bf16.msra.mxu0 %v1745
  %1884 = vmatprep.subr.bf16.mxu0 %v1748
  %1885 = vmatpush1.bf16.msra.mxu0 %v1747
  %1886 = vmatprep.subr.bf16.mxu0 %v1750
  %1887 = vmatpush1.bf16.msra.mxu0 %v1749
  %1888 = vmatprep.mubr.bf16.mxu0 %v1338
  %1889 = vmatmul.mubr.bf16.gmra.mrb[0].mxu0 %v1247
  %v1890 = vpop.f32.mrb[0].mxu0
  %v1891 = vadd.f32 %v1850, %v1890
  %v1892 = vpop.f32.mrb[0].mxu0
  %v1893 = vadd.f32 %v1852, %v1892
  %v1894 = vpop.f32.mrb[0].mxu0
  %v1895 = vpop.f32.mrb[0].mxu0
  %1896 = vdwg.mxu0
  %v1897 = vmax.f32 %v1891, %v1893
  %v1899 = vlaneseq
  %v1900 = vshrl.u32 %v1899, 7
  %v1901 = vsub.s32 0, %v1900
  %v1902 = vrot.slane %v1494, %v1901
  %v1904 = vadd.f32 %v1897, %v1902
  %v1905 = vmax.f32 %v1904, 0.0
  %1907 = vrot.lane.b32.xlu0 %v1905, 96
  %v1908 = vpop.permute.xlu0 %1907
  %v1910 = vmax.f32 %v1905, %v1908
  %v1911 = vpack.c.bf16 %v1910, %v1910
  %1912 = vmatprep.subr.bf16.mxu0 %v1688
  %1913 = vmatpush1.bf16.msra.mxu0 %v1687
  %1914 = vmatprep.subr.bf16.mxu0 %v1690
  %1915 = vmatpush1.bf16.msra.mxu0 %v1689
  %1916 = vmatprep.subr.bf16.mxu0 %v1692
  %1917 = vmatpush1.bf16.msra.mxu0 %v1691
  %1918 = vmatprep.subr.bf16.mxu0 %v1694
  %1919 = vmatpush1.bf16.msra.mxu0 %v1693
  %1920 = vmatprep.subr.bf16.mxu0 %v1696
  %1921 = vmatpush1.bf16.msra.mxu0 %v1695
  %1922 = vmatprep.subr.bf16.mxu0 %v1698
  %1923 = vmatpush1.bf16.msra.mxu0 %v1697
  %1924 = vmatprep.subr.bf16.mxu0 %v1700
  %1925 = vmatpush1.bf16.msra.mxu0 %v1699
  %1926 = vmatprep.subr.bf16.mxu0 %v1702
  %1927 = vmatpush1.bf16.msra.mxu0 %v1701
  %1928 = vmatprep.subr.bf16.mxu0 %v1704
  %1929 = vmatpush1.bf16.msra.mxu0 %v1703
  %1930 = vmatprep.subr.bf16.mxu0 %v1706
  %1931 = vmatpush1.bf16.msra.mxu0 %v1705
  %1932 = vmatprep.subr.bf16.mxu0 %v1708
  %1933 = vmatpush1.bf16.msra.mxu0 %v1707
  %1934 = vmatprep.subr.bf16.mxu0 %v1710
  %1935 = vmatpush1.bf16.msra.mxu0 %v1709
  %1936 = vmatprep.subr.bf16.mxu0 %v1712
  %1937 = vmatpush1.bf16.msra.mxu0 %v1711
  %1938 = vmatprep.subr.bf16.mxu0 %v1714
  %1939 = vmatpush1.bf16.msra.mxu0 %v1713
  %1940 = vmatprep.subr.bf16.mxu0 %v1716
  %1941 = vmatpush1.bf16.msra.mxu0 %v1715
  %1942 = vmatprep.subr.bf16.mxu0 %v1718
  %1943 = vmatpush1.bf16.msra.mxu0 %v1717
  %1944 = vmatprep.mubr.bf16.mxu0 %v1338
  %1945 = vmatmul.mubr.bf16.gmra.mrb[0].mxu0 %v1247
  %v1946 = vpop.f32.mrb[0].mxu0
  %v1947 = vadd.f32 0.0, %v1946
  %v1948 = vpop.f32.mrb[0].mxu0
  %v1949 = vadd.f32 0.0, %v1948
  %v1950 = vpop.f32.mrb[0].mxu0
  %v1951 = vpop.f32.mrb[0].mxu0
  %1952 = vdwg.mxu0
  %1953 = vmatprep.subr.bf16.mxu0 %v1720
  %1954 = vmatpush1.bf16.msra.mxu0 %v1719
  %1955 = vmatprep.subr.bf16.mxu0 %v1722
  %1956 = vmatpush1.bf16.msra.mxu0 %v1721
  %1957 = vmatprep.subr.bf16.mxu0 %v1724
  %1958 = vmatpush1.bf16.msra.mxu0 %v1723
  %1959 = vmatprep.subr.bf16.mxu0 %v1726
  %1960 = vmatpush1.bf16.msra.mxu0 %v1725
  %1961 = vmatprep.subr.bf16.mxu0 %v1728
  %1962 = vmatpush1.bf16.msra.mxu0 %v1727
  %1963 = vmatprep.subr.bf16.mxu0 %v1730
  %1964 = vmatpush1.bf16.msra.mxu0 %v1729
  %1965 = vmatprep.subr.bf16.mxu0 %v1732
  %1966 = vmatpush1.bf16.msra.mxu0 %v1731
  %1967 = vmatprep.subr.bf16.mxu0 %v1734
  %1968 = vmatpush1.bf16.msra.mxu0 %v1733
  %1969 = vmatprep.subr.bf16.mxu0 %v1736
  %1970 = vmatpush1.bf16.msra.mxu0 %v1735
  %1971 = vmatprep.subr.bf16.mxu0 %v1738
  %1972 = vmatpush1.bf16.msra.mxu0 %v1737
  %1973 = vmatprep.subr.bf16.mxu0 %v1740
  %1974 = vmatpush1.bf16.msra.mxu0 %v1739
  %1975 = vmatprep.subr.bf16.mxu0 %v1742
  %1976 = vmatpush1.bf16.msra.mxu0 %v1741
  %1977 = vmatprep.subr.bf16.mxu0 %v1744
  %1978 = vmatpush1.bf16.msra.mxu0 %v1743
  %1979 = vmatprep.subr.bf16.mxu0 %v1746
  %1980 = vmatpush1.bf16.msra.mxu0 %v1745
  %1981 = vmatprep.subr.bf16.mxu0 %v1748
  %1982 = vmatpush1.bf16.msra.mxu0 %v1747
  %1983 = vmatprep.subr.bf16.mxu0 %v1750
  %1984 = vmatpush1.bf16.msra.mxu0 %v1749
  %1985 = vmatprep.mubr.bf16.mxu0 0
  %1986 = vmatmul.mubr.bf16.gmra.mrb[0].mxu0 %v1429
  %v1987 = vpop.f32.mrb[0].mxu0
  %v1988 = vadd.f32 %v1947, %v1987
  %v1989 = vpop.f32.mrb[0].mxu0
  %v1990 = vadd.f32 %v1949, %v1989
  %v1991 = vpop.f32.mrb[0].mxu0
  %v1992 = vpop.f32.mrb[0].mxu0
  %1993 = vdwg.mxu0
  %v1994 = vmax.f32 %v1988, %v1990
  %v1995 = vadd.f32 %v1994, %v1902
  %v1996 = vmax.f32 %v1995, 0.0
  %1998 = vrot.lane.b32.xlu0 %v1996, 96
  %v1999 = vpop.permute.xlu0 %1998
  %v2001 = vmax.f32 %v1996, %v1999
  %v2002 = vpack.c.bf16 %v2001, %v2001
  %v2003 = vld [vmem:[%s7] sm:$0xf]
  %v2004 = vld [vmem:[%s7 + $0x4] sm:$0xf]
  %v2005 = vld [vmem:[%s7 + $0x8] sm:$0xf]
  %v2006 = vld [vmem:[%s7 + $0xc] sm:$0xf]
  %v2007 = vld [vmem:[%s7 + $0x10] sm:$0xf]
  %v2008 = vld [vmem:[%s7 + $0x14] sm:$0xf]
  %v2009 = vld [vmem:[%s7 + $0x18] sm:$0xf]
  %v2010 = vld [vmem:[%s7 + $0x1c] sm:$0xf]
  %v2011 = vld [vmem:[%s7 + $0x20] sm:$0xf]
  %v2012 = vld [vmem:[%s7 + $0x24] sm:$0xf]
  %v2013 = vld [vmem:[%s7 + $0x28] sm:$0xf]
  %v2014 = vld [vmem:[%s7 + $0x2c] sm:$0xf]
  %v2015 = vld [vmem:[%s7 + $0x30] sm:$0xf]
  %v2016 = vld [vmem:[%s7 + $0x34] sm:$0xf]
  %v2017 = vld [vmem:[%s7 + $0x38] sm:$0xf]
  %v2018 = vld [vmem:[%s7 + $0x3c] sm:$0xf]
  %v2019 = vld [vmem:[%s7 + $0x40] sm:$0xf]
  %v2020 = vld [vmem:[%s7 + $0x44] sm:$0xf]
  %v2021 = vld [vmem:[%s7 + $0x48] sm:$0xf]
  %v2022 = vld [vmem:[%s7 + $0x4c] sm:$0xf]
  %v2023 = vld [vmem:[%s7 + $0x50] sm:$0xf]
  %v2024 = vld [vmem:[%s7 + $0x54] sm:$0xf]
  %v2025 = vld [vmem:[%s7 + $0x58] sm:$0xf]
  %v2026 = vld [vmem:[%s7 + $0x5c] sm:$0xf]
  %v2027 = vld [vmem:[%s7 + $0x60] sm:$0xf]
  %v2028 = vld [vmem:[%s7 + $0x64] sm:$0xf]
  %v2029 = vld [vmem:[%s7 + $0x68] sm:$0xf]
  %v2030 = vld [vmem:[%s7 + $0x6c] sm:$0xf]
  %v2031 = vld [vmem:[%s7 + $0x70] sm:$0xf]
  %v2032 = vld [vmem:[%s7 + $0x74] sm:$0xf]
  %v2033 = vld [vmem:[%s7 + $0x78] sm:$0xf]
  %v2034 = vld [vmem:[%s7 + $0x7c] sm:$0xf]
  %v2035 = vld [vmem:[%s8] sm:$0x1]
  %v2037 = vlaneseq
  %v2038 = vshrl.u32 %v2037, 7
  %v2039 = vsub.s32 0, %v2038
  %v2040 = vrot.slane %v2035, %v2039
  %v2074 = vunpack.c.l.b16 %v2003
  %v2075 = vunpack.c.l.b16 %v2004
  %v2076 = vunpack.c.l.b16 %v2005
  %v2077 = vunpack.c.l.b16 %v2006
  %v2078 = vunpack.c.l.b16 %v2007
  %v2079 = vunpack.c.l.b16 %v2008
  %v2080 = vunpack.c.l.b16 %v2009
  %v2081 = vunpack.c.l.b16 %v2010
  %v2082 = vunpack.c.l.b16 %v2011
  %v2083 = vunpack.c.l.b16 %v2012
  %v2084 = vunpack.c.l.b16 %v2013
  %v2085 = vunpack.c.l.b16 %v2014
  %v2086 = vunpack.c.l.b16 %v2015
  %v2087 = vunpack.c.l.b16 %v2016
  %v2088 = vunpack.c.l.b16 %v2017
  %v2089 = vunpack.c.l.b16 %v2018
  %v2090 = vunpack.c.l.b16 %v2019
  %v2091 = vunpack.c.l.b16 %v2020
  %v2092 = vunpack.c.l.b16 %v2021
  %v2093 = vunpack.c.l.b16 %v2022
  %v2094 = vunpack.c.l.b16 %v2023
  %v2095 = vunpack.c.l.b16 %v2024
  %v2096 = vunpack.c.l.b16 %v2025
  %v2097 = vunpack.c.l.b16 %v2026
  %v2098 = vunpack.c.l.b16 %v2027
  %v2099 = vunpack.c.l.b16 %v2028
  %v2100 = vunpack.c.l.b16 %v2029
  %v2101 = vunpack.c.l.b16 %v2030
  %v2102 = vunpack.c.l.b16 %v2031
  %v2103 = vunpack.c.l.b16 %v2032
  %v2104 = vunpack.c.l.b16 %v2033
  %v2105 = vunpack.c.l.b16 %v2034
  %v2106 = vpack.c.b16 %v2075, %v2074
  %v2107 = vpack.c.b16 %v2077, %v2076
  %v2108 = vpack.c.b16 %v2079, %v2078
  %v2109 = vpack.c.b16 %v2081, %v2080
  %v2110 = vpack.c.b16 %v2083, %v2082
  %v2111 = vpack.c.b16 %v2085, %v2084
  %v2112 = vpack.c.b16 %v2087, %v2086
  %v2113 = vpack.c.b16 %v2089, %v2088
  %v2114 = vpack.c.b16 %v2091, %v2090
  %v2115 = vpack.c.b16 %v2093, %v2092
  %v2116 = vpack.c.b16 %v2095, %v2094
  %v2117 = vpack.c.b16 %v2097, %v2096
  %v2118 = vpack.c.b16 %v2099, %v2098
  %v2119 = vpack.c.b16 %v2101, %v2100
  %v2120 = vpack.c.b16 %v2103, %v2102
  %v2121 = vpack.c.b16 %v2105, %v2104
  %2138 = vmatprep.subr.bf16.mxu0 0
  %2139 = vmatpush1.bf16.msra.mxu0 %v2106
  %2140 = vmatprep.subr.bf16.mxu0 0
  %2141 = vmatpush1.bf16.msra.mxu0 %v2107
  %2142 = vmatprep.subr.bf16.mxu0 0
  %2143 = vmatpush1.bf16.msra.mxu0 %v2108
  %2144 = vmatprep.subr.bf16.mxu0 0
  %2145 = vmatpush1.bf16.msra.mxu0 %v2109
  %2146 = vmatprep.subr.bf16.mxu0 0
  %2147 = vmatpush1.bf16.msra.mxu0 %v2110
  %2148 = vmatprep.subr.bf16.mxu0 0
  %2149 = vmatpush1.bf16.msra.mxu0 %v2111
  %2150 = vmatprep.subr.bf16.mxu0 0
  %2151 = vmatpush1.bf16.msra.mxu0 %v2112
  %2152 = vmatprep.subr.bf16.mxu0 0
  %2153 = vmatpush1.bf16.msra.mxu0 %v2113
  %2154 = vmatprep.subr.bf16.mxu0 0
  %2155 = vmatpush1.bf16.msra.mxu0 %v2114
  %2156 = vmatprep.subr.bf16.mxu0 0
  %2157 = vmatpush1.bf16.msra.mxu0 %v2115
  %2158 = vmatprep.subr.bf16.mxu0 0
  %2159 = vmatpush1.bf16.msra.mxu0 %v2116
  %2160 = vmatprep.subr.bf16.mxu0 0
  %2161 = vmatpush1.bf16.msra.mxu0 %v2117
  %2162 = vmatprep.subr.bf16.mxu0 0
  %2163 = vmatpush1.bf16.msra.mxu0 %v2118
  %2164 = vmatprep.subr.bf16.mxu0 0
  %2165 = vmatpush1.bf16.msra.mxu0 %v2119
  %2166 = vmatprep.subr.bf16.mxu0 0
  %2167 = vmatpush1.bf16.msra.mxu0 %v2120
  %2168 = vmatprep.subr.bf16.mxu0 0
  %2169 = vmatpush1.bf16.msra.mxu0 %v2121
  %2170 = vmatprep.mubr.bf16.mxu0 %v2002
  %2171 = vmatmul.mubr.bf16.gmra.mrb[0].mxu0 %v1911
  %v2172 = vpop.f32.mrb[0].mxu0
  %v2173 = vadd.f32 %v2040, %v2172
  %v2174 = vpop.f32.mrb[0].mxu0
  %v2175 = vpop.f32.mrb[0].mxu0
  %v2176 = vpop.f32.mrb[0].mxu0
  %2177 = vdwg.mxu0
  %v2178 = vmax.f32 %v2173, 0.0
  %v2179 = vpack.c.bf16 %v2178, %v2178
  %v2180 = vld [vmem:[%s9] sm:$0xf]
  %v2181 = vld [vmem:[%s9 + $0x4] sm:$0xf]
  %v2182 = vld [vmem:[%s9 + $0x8] sm:$0xf]
  %v2183 = vld [vmem:[%s9 + $0xc] sm:$0xf]
  %v2184 = vld [vmem:[%s10] sm:$0x1]
  %v2186 = vlaneseq
  %v2187 = vshrl.u32 %v2186, 7
  %v2188 = vsub.s32 0, %v2187
  %v2189 = vrot.slane %v2184, %v2188
  %v2195 = vunpack.c.l.b16 %v2180
  %v2196 = vunpack.c.l.b16 %v2181
  %v2197 = vunpack.c.l.b16 %v2182
  %v2198 = vunpack.c.l.b16 %v2183
  %v2199 = vpack.c.b16 %v2196, %v2195
  %v2200 = vpack.c.b16 %v2198, %v2197
  %vm2203 = vcmask 261120
  %v2205 = vsel %vm2203, %v2179, 0
  %2207 = vmatprep.subr.bf16.mxu0 0
  %2208 = vmatpush1.bf16.msra.mxu0 %v2199
  %2209 = vmatprep.subr.bf16.mxu0 0
  %2210 = vmatpush1.bf16.msra.mxu0 %v2200
  %2211 = vmatprep.subr.bf16.mxu0 0
  %2212 = vmatpush1.bf16.msra.mxu0 0
  %2213 = vmatprep.subr.bf16.mxu0 0
  %2214 = vmatpush1.bf16.msra.mxu0 0
  %2215 = vmatprep.subr.bf16.mxu0 0
  %2216 = vmatpush1.bf16.msra.mxu0 0
  %2217 = vmatprep.subr.bf16.mxu0 0
  %2218 = vmatpush1.bf16.msra.mxu0 0
  %2219 = vmatprep.subr.bf16.mxu0 0
  %2220 = vmatpush1.bf16.msra.mxu0 0
  %2221 = vmatprep.subr.bf16.mxu0 0
  %2222 = vmatpush1.bf16.msra.mxu0 0
  %2223 = vmatprep.subr.bf16.mxu0 0
  %2224 = vmatpush1.bf16.msra.mxu0 0
  %2225 = vmatprep.subr.bf16.mxu0 0
  %2226 = vmatpush1.bf16.msra.mxu0 0
  %2227 = vmatprep.subr.bf16.mxu0 0
  %2228 = vmatpush1.bf16.msra.mxu0 0
  %2229 = vmatprep.subr.bf16.mxu0 0
  %2230 = vmatpush1.bf16.msra.mxu0 0
  %2231 = vmatprep.subr.bf16.mxu0 0
  %2232 = vmatpush1.bf16.msra.mxu0 0
  %2233 = vmatprep.subr.bf16.mxu0 0
  %2234 = vmatpush1.bf16.msra.mxu0 0
  %2235 = vmatprep.subr.bf16.mxu0 0
  %2236 = vmatpush1.bf16.msra.mxu0 0
  %2237 = vmatprep.subr.bf16.mxu0 0
  %2238 = vmatpush1.bf16.msra.mxu0 0
  %2239 = vmatprep.mubr.bf16.mxu0 0
  %2240 = vmatmul.mubr.bf16.gmra.mrb[0].mxu0 %v2205
  %v2241 = vpop.f32.mrb[0].mxu0
  %v2242 = vadd.f32 %v2189, %v2241
  %v2243 = vpop.f32.mrb[0].mxu0
  %v2244 = vpop.f32.mrb[0].mxu0
  %v2245 = vpop.f32.mrb[0].mxu0
  %2246 = vdwg.mxu0
  %2247 = vst [vmem:[%s11] sm:$0xff] %v2242
  // Predicated region
  $region46: #{_forward_impl.1} parent=0 // pred_check
    _
  $region47: #{_forward_impl.1} parent=0 // pred_check_branch
    %2249 = sbr.rel (0) target = $region49
  $region48: #{_forward_impl.1} parent=0 // pred_region
    _
  $region49: #{_forward_impl.1} parent=0 // pred_fallthru
    _
  // Predicated region
  $region50: #{_forward_impl.1} parent=0 // pred_check
    _
  $region51: #{_forward_impl.1} parent=0 // pred_check_branch
    %2251 = sbr.rel (0) target = $region53
  $region52: #{_forward_impl.1} parent=0 // pred_region
    _
  $region53: #{_forward_impl.1} parent=0 // pred_fallthru
    _

</llo_original>
